<compile_context>
chip_gen: v5e
topology: v5e:2x2
jax: 0.10.0
libtpu: 0.0.40
codegen_flags: <defaults>
</compile_context>

<pallas_src>
import functools
import math

import jax
import jax.numpy as jnp
from jax.experimental import pallas as pl
from jax.experimental.pallas import tpu as pltpu

LN_EPS = 1e-12
MASK_NEG = -10000.0            # classic BERT additive-mask value
MATMUL_DTYPE = jnp.bfloat16    # MXU operand dtype (accumulation stays f32)
FFN_CHUNK = 512                # tile width along the 4H axis of the FFN
VMEM_LIMIT_BYTES = 48 * 1024 * 1024


# ---------------------------------------------------------------------------
# Shared math helpers (pure jnp; used inside kernels and in the JAX reference).
# ---------------------------------------------------------------------------
def _layernorm(x, gamma, beta):
    mean = jnp.mean(x, axis=-1, keepdims=True)
    var = jnp.mean((x - mean) ** 2, axis=-1, keepdims=True)
    return (x - mean) * jax.lax.rsqrt(var + LN_EPS) * gamma + beta


def _gelu(x):  # exact (erf-based) GELU, as in BERT's "gelu"
    return 0.5 * x * (1.0 + jax.lax.erf(x * (1.0 / math.sqrt(2.0))))


# ---------------------------------------------------------------------------
# Fused encoder kernel: grid = (batch, layer); residual stream carried in VMEM.
# ---------------------------------------------------------------------------
def fused_encoder_kernel(emb_ref, pos_ref, eg_ref, eb_ref, mask_ref,
                         wqkv_ref, bqkv_ref, wo_ref, bo_ref, ln1g_ref, ln1b_ref,
                         w1_ref, b1_ref, w2_ref, b2_ref, ln2g_ref, ln2b_ref,
                         pool_ref, x_ref, ctx_ref, *, num_heads, ffn_chunk):
    l = pl.program_id(1)
    num_layers = pl.num_programs(1)
    cd = wqkv_ref.dtype                                   # bf16 compute dtype

    # ---- layer 0 only: embedding sum + LayerNorm into the VMEM residual ----
    @pl.when(l == 0)
    def _():
        x_ref[...] = _layernorm(emb_ref[0] + pos_ref[...],
                                eg_ref[...], eb_ref[...])

    x = x_ref[...]                                        # (S, H) f32 residual
    S, H = x.shape
    hd = H // num_heads

    # Fused full-width QKV projection: (S,H) x (H,3H), f32 accumulation, then a
    # SINGLE bf16 cast (wq / bq were pre-scaled by 1/sqrt(head_dim) at prep).
    qkv = (jnp.dot(x.astype(cd), wqkv_ref[0],
                   preferred_element_type=jnp.float32) + bqkv_ref[0]).astype(cd)

    mask_row = mask_ref[0]                                # (1, S) additive mask

    # Static head loop; each head's context is written straight into the bf16
    # (S,H) VMEM scratch (no concatenate / relayout, no f32 ctx temp).
    for n in range(num_heads):
        q = qkv[:, n * hd:(n + 1) * hd]
        k = qkv[:, H + n * hd:H + (n + 1) * hd]
        v = qkv[:, 2 * H + n * hd:2 * H + (n + 1) * hd]
        s = jax.lax.dot_general(q, k, (((1,), (1,)), ((), ())),
                                preferred_element_type=jnp.float32)     # (S, S)
        s = s + mask_row                                  # (S,S) + (1,S) bcast
        m = jnp.max(s, axis=-1, keepdims=True)
        e = jnp.exp(s - m)
        p = (e * pl.reciprocal(jnp.sum(e, axis=-1, keepdims=True),
                               approx=True)).astype(cd)
        ctx_ref[:, n * hd:(n + 1) * hd] = jnp.dot(
            p, v, preferred_element_type=jnp.float32).astype(cd)

    # Single full-width out-projection on the assembled contexts.
    attn = jnp.dot(ctx_ref[...], wo_ref[0],
                   preferred_element_type=jnp.float32) + bo_ref[0]
    h1 = _layernorm(x + attn, ln1g_ref[0], ln1b_ref[0])
    h1b = h1.astype(cd)

    # FFN, tiled along the 4H axis so the (S,4H) f32 GELU temp is bounded.
    F = w1_ref.shape[-1]
    n_chunks = (F + ffn_chunk - 1) // ffn_chunk
    ff = None
    for c in range(n_chunks):
        lo = c * ffn_chunk
        hi = min(lo + ffn_chunk, F)
        hcol = _gelu(jnp.dot(h1b, w1_ref[0, :, lo:hi],
                             preferred_element_type=jnp.float32)
                     + b1_ref[0, :, lo:hi])
        part = jnp.dot(hcol.astype(cd), w2_ref[0, lo:hi, :],
                       preferred_element_type=jnp.float32)
        ff = part if ff is None else ff + part
    ff = ff + b2_ref[0]

    y = _layernorm(h1 + ff, ln2g_ref[0], ln2b_ref[0])
    x_ref[...] = y                                        # carry to next layer

    # 'last-avg' pooling, emitted only for the final layer (lane-dense store).
    @pl.when(l == num_layers - 1)
    def _():
        pool_ref[0] = jnp.mean(y, axis=0, keepdims=True)


def fused_encoder(emb_sum, pos, emb_g, emb_b, mask_add, w, num_heads):
    B, S, H = emb_sum.shape
    L = w["wqkv"].shape[0]
    F = w["w1"].shape[-1]
    ffn_chunk = min(F, FFN_CHUNK)

    wargs = (w["wqkv"], w["bqkv"], w["wo"], w["bo"], w["ln1_g"], w["ln1_b"],
             w["w1"], w["b1"], w["w2"], w["b2"], w["ln2_g"], w["ln2_b"])
    weight_specs = [pl.BlockSpec((1,) + a.shape[1:], lambda b, l: (l, 0, 0))
                    for a in wargs]                        # streamed per layer

    in_specs = [
        pl.BlockSpec((1, S, H), lambda b, l: (b, 0, 0)),   # word+type emb sum
        pl.BlockSpec((S, H), lambda b, l: (0, 0)),         # positional emb
        pl.BlockSpec((1, H), lambda b, l: (0, 0)),         # emb LN gamma
        pl.BlockSpec((1, H), lambda b, l: (0, 0)),         # emb LN beta
        pl.BlockSpec((1, 1, S), lambda b, l: (b, 0, 0)),   # additive mask
    ] + weight_specs

    kernel = functools.partial(fused_encoder_kernel,
                               num_heads=num_heads, ffn_chunk=ffn_chunk)
    pooled = pl.pallas_call(
        kernel,
        grid=(B, L),
        out_shape=jax.ShapeDtypeStruct((B, 1, H), jnp.float32),
        in_specs=in_specs,
        out_specs=pl.BlockSpec((1, 1, H), lambda b, l: (b, 0, 0)),
        scratch_shapes=[pltpu.VMEM((S, H), jnp.float32),     # residual stream
                        pltpu.VMEM((S, H), MATMUL_DTYPE)],   # attn contexts
        compiler_params=pltpu.CompilerParams(
            dimension_semantics=("parallel", "arbitrary"),
            vmem_limit_bytes=VMEM_LIMIT_BYTES),
    )(emb_sum, pos, emb_g, emb_b, mask_add, *wargs)
    return pooled


# ---------------------------------------------------------------------------
# Parameter preparation (done ONCE, outside the per-forward path):
# fuse QKV, pre-scale Q by 1/sqrt(head_dim), cast matmul weights to bf16,
# stack every per-layer tensor along a leading L axis for in-kernel streaming.
# ---------------------------------------------------------------------------
def prepare_params(params, num_heads):
    H = params["word_emb"].shape[1]
    hd = H // num_heads
    qscale = 1.0 / math.sqrt(hd)
    layers = params["layers"]

    def stack(fn):
        return jnp.stack([fn(lw) for lw in layers], axis=0)

    stacked = {
        "wqkv": stack(lambda lw: jnp.concatenate(
            [lw["wq"] * qscale, lw["wk"], lw["wv"]], axis=1)).astype(MATMUL_DTYPE),
        "bqkv": stack(lambda lw: jnp.concatenate(
            [lw["bq"] * qscale, lw["bk"], lw["bv"]], axis=0).reshape(1, 3 * H)),
        "wo": stack(lambda lw: lw["wo"]).astype(MATMUL_DTYPE),
        "bo": stack(lambda lw: lw["bo"].reshape(1, H)),
        "ln1_g": stack(lambda lw: lw["ln1_g"].reshape(1, H)),
        "ln1_b": stack(lambda lw: lw["ln1_b"].reshape(1, H)),
        "w1": stack(lambda lw: lw["w1"]).astype(MATMUL_DTYPE),
        "b1": stack(lambda lw: lw["b1"].reshape(1, 4 * H)),
        "w2": stack(lambda lw: lw["w2"]).astype(MATMUL_DTYPE),
        "b2": stack(lambda lw: lw["b2"].reshape(1, H)),
        "ln2_g": stack(lambda lw: lw["ln2_g"].reshape(1, H)),
        "ln2_b": stack(lambda lw: lw["ln2_b"].reshape(1, H)),
    }
    return {
        "word_emb": params["word_emb"],
        "pos_emb": params["pos_emb"],
        "type_emb": params["type_emb"],
        "emb_ln_g": params["emb_ln_g"].reshape(1, H),
        "emb_ln_b": params["emb_ln_b"].reshape(1, H),
        "stacked": stacked,
    }


# ---------------------------------------------------------------------------
# SimCSE forward (glue: embedding gathers + one fused Pallas encoder call)
# ---------------------------------------------------------------------------
def simcse_forward(prep, input_ids, attention_mask, token_type_ids, num_heads,
                   use_token_type=True):
    B, S = input_ids.shape
    H = prep["word_emb"].shape[1]
    we = prep["word_emb"][input_ids]                      # (B,S,H) gather (glue)
    if use_token_type:
        te = prep["type_emb"][token_type_ids]
    else:
        te = jnp.broadcast_to(prep["type_emb"][0][None, None, :], (B, S, H))
    emb_sum = we + te                                     # pos-add + LN fused in-kernel
    pos = prep["pos_emb"][:S]                             # (S,H)
    mask_add = ((1.0 - attention_mask.astype(jnp.float32)) * MASK_NEG)[:, None, :]

    pooled = fused_encoder(emb_sum, pos, prep["emb_ln_g"], prep["emb_ln_b"],
                           mask_add, prep["stacked"], num_heads)
    return pooled[:, 0, :]                                # (B, H)


# ---------------------------------------------------------------------------
# Pure-JAX f32 reference (independent path, full-size weights)
# ---------------------------------------------------------------------------
def ref_forward(params, input_ids, attention_mask, token_type_ids, num_heads):
    B, S = input_ids.shape
    H = params["word_emb"].shape[1]
    hd = H // num_heads
    x = (params["word_emb"][input_ids]
         + params["pos_emb"][:S][None, :, :]
         + params["type_emb"][token_type_ids])
    x = _layernorm(x, params["emb_ln_g"], params["emb_ln_b"])
    mask = ((1.0 - attention_mask.astype(jnp.float32)) * MASK_NEG)[:, None, None, :]
    for lw in params["layers"]:
        q = (x @ lw["wq"] + lw["bq"]).reshape(B, S, num_heads, hd).transpose(0, 2, 1, 3)
        k = (x @ lw["wk"] + lw["bk"]).reshape(B, S, num_heads, hd).transpose(0, 2, 1, 3)
        v = (x @ lw["wv"] + lw["bv"]).reshape(B, S, num_heads, hd).transpose(0, 2, 1, 3)
        s = jnp.einsum("bnqd,bnkd->bnqk", q, k) / math.sqrt(hd) + mask
        p = jax.nn.softmax(s, axis=-1)
        ctx = jnp.einsum("bnqk,bnkd->bnqd", p, v).transpose(0, 2, 1, 3).reshape(B, S, H)
        x = _layernorm(x + ctx @ lw["wo"] + lw["bo"], lw["ln1_g"], lw["ln1_b"])
        ff = _gelu(x @ lw["w1"] + lw["b1"]) @ lw["w2"] + lw["b2"]
        x = _layernorm(x + ff, lw["ln2_g"], lw["ln2_b"])
    return jnp.mean(x, axis=1)


# ---------------------------------------------------------------------------
# Deterministic synthetic parameters (shapes per BertConfig in the module)
# ---------------------------------------------------------------------------
def init_params(key, num_layers, hidden, vocab=21128, max_pos=512, type_vocab=16):
    n_keys = 3 + 12 * num_layers
    keys = iter(jax.random.split(key, n_keys))

    def w(shape):
        return (0.02 * jax.random.normal(next(keys), shape)).astype(jnp.float32)

    params = {
        "word_emb": w((vocab, hidden)),
        "pos_emb": w((max_pos, hidden)),
        "type_emb": w((type_vocab, hidden)),
        "emb_ln_g": jnp.ones((hidden,), jnp.float32),
        "emb_ln_b": jnp.zeros((hidden,), jnp.float32),
        "layers": [],
    }
    for _ in range(num_layers):
        params["layers"].append({
            "wq": w((hidden, hidden)), "bq": w((hidden,)),
            "wk": w((hidden, hidden)), "bk": w((hidden,)),
            "wv": w((hidden, hidden)), "bv": w((hidden,)),
            "wo": w((hidden, hidden)), "bo": w((hidden,)),
            "ln1_g": jnp.ones((hidden,), jnp.float32),
            "ln1_b": jnp.zeros((hidden,), jnp.float32),
            "w1": w((hidden, 4 * hidden)), "b1": w((4 * hidden,)),
            "w2": w((4 * hidden, hidden)), "b2": w((hidden,)),
            "ln2_g": jnp.ones((hidden,), jnp.float32),
            "ln2_b": jnp.zeros((hidden,), jnp.float32),
        })
    return params


if __name__ == "__main__":
    NUM_LAYERS = 2
    HIDDEN = 32
    NUM_HEADS = NUM_LAYERS          # module sets num_attention_heads = num_hidden_layers
    B, S = 2, 8

    key = jax.random.PRNGKey(0)
    kp, kid, ktt = jax.random.split(key, 3)
    params = init_params(kp, NUM_LAYERS, HIDDEN)
    prep = prepare_params(params, NUM_HEADS)    # one-time repack (fused QKV, bf16, L-stacked)

    input_ids = jax.random.randint(kid, (B, S), 0, 21128, dtype=jnp.int32)
    token_type_ids = jax.random.randint(ktt, (B, S), 0, 16, dtype=jnp.int32)
    attention_mask = jnp.array([[1, 1, 1, 1, 1, 1, 1, 1],
                                [1, 1, 1, 1, 1, 0, 0, 0]], dtype=jnp.int32)

    forward = jax.jit(simcse_forward, static_argnums=(4, 5))
    out = forward(prep, input_ids, attention_mask, token_type_ids, NUM_HEADS, True)
    out = jax.block_until_ready(out)

    ref = ref_forward(params, input_ids, attention_mask, token_type_ids, NUM_HEADS)
    assert out.shape == (B, HIDDEN), out.shape
    # bf16 MXU operands + approx reciprocal vs. the full-f32 reference.
    assert jnp.allclose(out, ref, atol=2e-2, rtol=2e-2), (
        float(jnp.max(jnp.abs(out - ref))), out, ref)
    print("KERNEL_OK")
</pallas_src>

<mosaic_0001>
module attributes {stable_mosaic.version = 11 : i64} {
  func.func @fused_encoder_kernel(%arg0: i32, %arg1: i32, %arg2: memref<1x8x32xf32, #tpu.memory_space<vmem>>, %arg3: memref<8x32xf32, #tpu.memory_space<vmem>>, %arg4: memref<1x32xf32, #tpu.memory_space<vmem>>, %arg5: memref<1x32xf32, #tpu.memory_space<vmem>>, %arg6: memref<1x1x8xf32, #tpu.memory_space<vmem>>, %arg7: memref<1x32x96xbf16, #tpu.memory_space<vmem>>, %arg8: memref<1x1x96xf32, #tpu.memory_space<vmem>>, %arg9: memref<1x32x32xbf16, #tpu.memory_space<vmem>>, %arg10: memref<1x1x32xf32, #tpu.memory_space<vmem>>, %arg11: memref<1x1x32xf32, #tpu.memory_space<vmem>>, %arg12: memref<1x1x32xf32, #tpu.memory_space<vmem>>, %arg13: memref<1x32x128xbf16, #tpu.memory_space<vmem>>, %arg14: memref<1x1x128xf32, #tpu.memory_space<vmem>>, %arg15: memref<1x128x32xbf16, #tpu.memory_space<vmem>>, %arg16: memref<1x1x32xf32, #tpu.memory_space<vmem>>, %arg17: memref<1x1x32xf32, #tpu.memory_space<vmem>>, %arg18: memref<1x1x32xf32, #tpu.memory_space<vmem>>, %arg19: memref<1x1x32xf32, #tpu.memory_space<vmem>>, %arg20: memref<8x32xf32, #tpu.memory_space<vmem>>, %arg21: memref<8x32xbf16, #tpu.memory_space<vmem>>) attributes {dimension_semantics = [#tpu.dimension_semantics<parallel>, #tpu.dimension_semantics<arbitrary>], iteration_bounds = array<i64: 2, 2>, scalar_prefetch = 0 : i64, scratch_operands = 2 : i64, tpu.core_type = #tpu.core_type<tc>, window_params = [{transform_indices = @transform_0, window_bounds = array<i64: 1, 8, 32>}, {pipeline_mode = #tpu.pipeline_mode<synchronous>, transform_indices = @transform_1, window_bounds = array<i64: 8, 32>}, {pipeline_mode = #tpu.pipeline_mode<synchronous>, transform_indices = @transform_2, window_bounds = array<i64: 1, 32>}, {pipeline_mode = #tpu.pipeline_mode<synchronous>, transform_indices = @transform_3, window_bounds = array<i64: 1, 32>}, {transform_indices = @transform_4, window_bounds = array<i64: 1, 1, 8>}, {transform_indices = @transform_5, window_bounds = array<i64: 1, 32, 96>}, {transform_indices = @transform_6, window_bounds = array<i64: 1, 1, 96>}, {transform_indices = @transform_7, window_bounds = array<i64: 1, 32, 32>}, {transform_indices = @transform_8, window_bounds = array<i64: 1, 1, 32>}, {transform_indices = @transform_9, window_bounds = array<i64: 1, 1, 32>}, {transform_indices = @transform_10, window_bounds = array<i64: 1, 1, 32>}, {transform_indices = @transform_11, window_bounds = array<i64: 1, 32, 128>}, {transform_indices = @transform_12, window_bounds = array<i64: 1, 1, 128>}, {transform_indices = @transform_13, window_bounds = array<i64: 1, 128, 32>}, {transform_indices = @transform_14, window_bounds = array<i64: 1, 1, 32>}, {transform_indices = @transform_15, window_bounds = array<i64: 1, 1, 32>}, {transform_indices = @transform_16, window_bounds = array<i64: 1, 1, 32>}, {transform_indices = @transform_17, window_bounds = array<i64: 1, 1, 32>}]} {
    %c0_i32 = arith.constant 0 : i32
    %0 = arith.cmpi eq, %arg1, %c0_i32 : i32
    %1 = arith.extui %0 : i1 to i32
    %c0_i32_0 = arith.constant 0 : i32
    %2 = arith.cmpi ne, %1, %c0_i32_0 : i32
    scf.if %2 {
      %c0_73 = arith.constant 0 : index
      %c0_74 = arith.constant 0 : index
      %c0_75 = arith.constant 0 : index
      %145 = vector.load %arg2[%c0_73, %c0_74, %c0_75] : memref<1x8x32xf32, #tpu.memory_space<vmem>>, vector<1x8x32xf32>
      %146 = vector.shape_cast %145 : vector<1x8x32xf32> to vector<8x32xf32>
      %c0_76 = arith.constant 0 : index
      %c0_77 = arith.constant 0 : index
      %147 = vector.load %arg3[%c0_76, %c0_77] : memref<8x32xf32, #tpu.memory_space<vmem>>, vector<8x32xf32>
      %148 = arith.addf %146, %147 : vector<8x32xf32>
      %c0_78 = arith.constant 0 : index
      %c0_79 = arith.constant 0 : index
      %149 = vector.load %arg4[%c0_78, %c0_79] : memref<1x32xf32, #tpu.memory_space<vmem>>, vector<1x32xf32>
      %c0_80 = arith.constant 0 : index
      %c0_81 = arith.constant 0 : index
      %150 = vector.load %arg5[%c0_80, %c0_81] : memref<1x32xf32, #tpu.memory_space<vmem>>, vector<1x32xf32>
      %cst_82 = arith.constant dense<0.000000e+00> : vector<8xf32>
      %151 = vector.multi_reduction <add>, %148, %cst_82 [1] : vector<8x32xf32> to vector<8xf32>
      %152 = vector.shape_cast %151 : vector<8xf32> to vector<8x1xf32>
      %cst_83 = arith.constant 3.200000e+01 : f32
      %153 = vector.broadcast %cst_83 : f32 to vector<8x1xf32>
      %154 = arith.divf %152, %153 : vector<8x1xf32>
      %155 = vector.broadcast %154 : vector<8x1xf32> to vector<8x32xf32>
      %156 = arith.subf %148, %155 : vector<8x32xf32>
      %157 = arith.mulf %156, %156 : vector<8x32xf32>
      %cst_84 = arith.constant dense<0.000000e+00> : vector<8xf32>
      %158 = vector.multi_reduction <add>, %157, %cst_84 [1] : vector<8x32xf32> to vector<8xf32>
      %159 = vector.shape_cast %158 : vector<8xf32> to vector<8x1xf32>
      %cst_85 = arith.constant 3.200000e+01 : f32
      %160 = vector.broadcast %cst_85 : f32 to vector<8x1xf32>
      %161 = arith.divf %159, %160 : vector<8x1xf32>
      %162 = vector.broadcast %154 : vector<8x1xf32> to vector<8x32xf32>
      %163 = arith.subf %148, %162 : vector<8x32xf32>
      %cst_86 = arith.constant 9.99999996E-13 : f32
      %164 = vector.broadcast %cst_86 : f32 to vector<8x1xf32>
      %165 = arith.addf %161, %164 : vector<8x1xf32>
      %166 = math.rsqrt %165 : vector<8x1xf32>
      %167 = vector.broadcast %166 : vector<8x1xf32> to vector<8x32xf32>
      %168 = arith.mulf %163, %167 : vector<8x32xf32>
      %169 = vector.broadcast %149 : vector<1x32xf32> to vector<8x32xf32>
      %170 = arith.mulf %168, %169 : vector<8x32xf32>
      %171 = vector.broadcast %150 : vector<1x32xf32> to vector<8x32xf32>
      %172 = arith.addf %170, %171 : vector<8x32xf32>
      %c0_87 = arith.constant 0 : index
      %c0_88 = arith.constant 0 : index
      %173 = vector.load %arg20[%c0_87, %c0_88] : memref<8x32xf32, #tpu.memory_space<vmem>>, vector<8x32xf32>
      tpu.vector_store %arg20[%c0_87, %c0_88], %172 {strides = array<i32>} : memref<8x32xf32, #tpu.memory_space<vmem>>, vector<8x32xf32>,
    } else {
    }
    %c0 = arith.constant 0 : index
    %c0_1 = arith.constant 0 : index
    %3 = vector.load %arg20[%c0, %c0_1] : memref<8x32xf32, #tpu.memory_space<vmem>>, vector<8x32xf32>
    %4 = arith.truncf %3 : vector<8x32xf32> to vector<8x32xbf16>
    %c0_2 = arith.constant 0 : index
    %c0_3 = arith.constant 0 : index
    %c0_4 = arith.constant 0 : index
    %5 = vector.load %arg7[%c0_2, %c0_3, %c0_4] : memref<1x32x96xbf16, #tpu.memory_space<vmem>>, vector<1x32x96xbf16>
    %6 = vector.shape_cast %5 : vector<1x32x96xbf16> to vector<32x96xbf16>
    %cst = arith.constant dense<0.000000e+00> : vector<8x96xf32>
    %7 = tpu.matmul %4, %6, %cst {dimension_numbers = #tpu.dot_dimension_numbers<[1], [0], [0], [1], [0, 0, 1, 1], [], []>} : vector<8x32xbf16>, vector<32x96xbf16>, vector<8x96xf32> -> vector<8x96xf32>
    %c0_5 = arith.constant 0 : index
    %c0_6 = arith.constant 0 : index
    %c0_7 = arith.constant 0 : index
    %8 = vector.load %arg8[%c0_5, %c0_6, %c0_7] : memref<1x1x96xf32, #tpu.memory_space<vmem>>, vector<1x1x96xf32>
    %9 = vector.shape_cast %8 : vector<1x1x96xf32> to vector<1x96xf32>
    %10 = vector.broadcast %9 : vector<1x96xf32> to vector<8x96xf32>
    %11 = arith.addf %7, %10 : vector<8x96xf32>
    %12 = arith.truncf %11 : vector<8x96xf32> to vector<8x96xbf16>
    %c0_8 = arith.constant 0 : index
    %c0_9 = arith.constant 0 : index
    %c0_10 = arith.constant 0 : index
    %13 = vector.load %arg6[%c0_8, %c0_9, %c0_10] : memref<1x1x8xf32, #tpu.memory_space<vmem>>, vector<1x1x8xf32>
    %14 = vector.shape_cast %13 : vector<1x1x8xf32> to vector<1x8xf32>
    %15 = vector.extract_strided_slice %12 {offsets = [0, 0], sizes = [8, 16], strides = [1, 1]} : vector<8x96xbf16> to vector<8x16xbf16>
    %16 = vector.extract_strided_slice %12 {offsets = [0, 32], sizes = [8, 16], strides = [1, 1]} : vector<8x96xbf16> to vector<8x16xbf16>
    %17 = vector.extract_strided_slice %12 {offsets = [0, 64], sizes = [8, 16], strides = [1, 1]} : vector<8x96xbf16> to vector<8x16xbf16>
    %cst_11 = arith.constant dense<0.000000e+00> : vector<8x8xf32>
    %18 = tpu.matmul %15, %16, %cst_11 {dimension_numbers = #tpu.dot_dimension_numbers<[1], [1], [0], [0], [0, 0, 1, 0], [], []>} : vector<8x16xbf16>, vector<8x16xbf16>, vector<8x8xf32> -> vector<8x8xf32>
    %19 = vector.broadcast %14 : vector<1x8xf32> to vector<8x8xf32>
    %20 = arith.addf %18, %19 : vector<8x8xf32>
    %cst_12 = arith.constant dense<0xFF800000> : vector<8xf32>
    %21 = vector.multi_reduction <maximumf>, %20, %cst_12 [1] : vector<8x8xf32> to vector<8xf32>
    %22 = vector.shape_cast %21 : vector<8xf32> to vector<8x1xf32>
    %23 = vector.broadcast %22 : vector<8x1xf32> to vector<8x8xf32>
    %24 = arith.subf %20, %23 : vector<8x8xf32>
    %25 = math.exp %24 : vector<8x8xf32>
    %cst_13 = arith.constant dense<0.000000e+00> : vector<8xf32>
    %26 = vector.multi_reduction <add>, %25, %cst_13 [1] : vector<8x8xf32> to vector<8xf32>
    %27 = vector.shape_cast %26 : vector<8xf32> to vector<8x1xf32>
    %28 = tpu.reciprocal %27 {approx = true} : vector<8x1xf32> -> vector<8x1xf32>
    %29 = vector.broadcast %28 : vector<8x1xf32> to vector<8x8xf32>
    %30 = arith.mulf %25, %29 : vector<8x8xf32>
    %31 = arith.truncf %30 : vector<8x8xf32> to vector<8x8xbf16>
    %cst_14 = arith.constant dense<0.000000e+00> : vector<8x16xf32>
    %32 = tpu.matmul %31, %17, %cst_14 {dimension_numbers = #tpu.dot_dimension_numbers<[1], [0], [0], [1], [0, 0, 1, 1], [], []>} : vector<8x8xbf16>, vector<8x16xbf16>, vector<8x16xf32> -> vector<8x16xf32>
    %33 = arith.truncf %32 : vector<8x16xf32> to vector<8x16xbf16>
    %c0_15 = arith.constant 0 : index
    %c0_16 = arith.constant 0 : index
    %34 = vector.load %arg21[%c0_15, %c0_16] : memref<8x32xbf16, #tpu.memory_space<vmem>>, vector<8x16xbf16>
    tpu.vector_store %arg21[%c0_15, %c0_16], %33 {strides = array<i32>} : memref<8x32xbf16, #tpu.memory_space<vmem>>, vector<8x16xbf16>,
    %35 = vector.extract_strided_slice %12 {offsets = [0, 16], sizes = [8, 16], strides = [1, 1]} : vector<8x96xbf16> to vector<8x16xbf16>
    %36 = vector.extract_strided_slice %12 {offsets = [0, 48], sizes = [8, 16], strides = [1, 1]} : vector<8x96xbf16> to vector<8x16xbf16>
    %37 = vector.extract_strided_slice %12 {offsets = [0, 80], sizes = [8, 16], strides = [1, 1]} : vector<8x96xbf16> to vector<8x16xbf16>
    %cst_17 = arith.constant dense<0.000000e+00> : vector<8x8xf32>
    %38 = tpu.matmul %35, %36, %cst_17 {dimension_numbers = #tpu.dot_dimension_numbers<[1], [1], [0], [0], [0, 0, 1, 0], [], []>} : vector<8x16xbf16>, vector<8x16xbf16>, vector<8x8xf32> -> vector<8x8xf32>
    %39 = vector.broadcast %14 : vector<1x8xf32> to vector<8x8xf32>
    %40 = arith.addf %38, %39 : vector<8x8xf32>
    %cst_18 = arith.constant dense<0xFF800000> : vector<8xf32>
    %41 = vector.multi_reduction <maximumf>, %40, %cst_18 [1] : vector<8x8xf32> to vector<8xf32>
    %42 = vector.shape_cast %41 : vector<8xf32> to vector<8x1xf32>
    %43 = vector.broadcast %42 : vector<8x1xf32> to vector<8x8xf32>
    %44 = arith.subf %40, %43 : vector<8x8xf32>
    %45 = math.exp %44 : vector<8x8xf32>
    %cst_19 = arith.constant dense<0.000000e+00> : vector<8xf32>
    %46 = vector.multi_reduction <add>, %45, %cst_19 [1] : vector<8x8xf32> to vector<8xf32>
    %47 = vector.shape_cast %46 : vector<8xf32> to vector<8x1xf32>
    %48 = tpu.reciprocal %47 {approx = true} : vector<8x1xf32> -> vector<8x1xf32>
    %49 = vector.broadcast %48 : vector<8x1xf32> to vector<8x8xf32>
    %50 = arith.mulf %45, %49 : vector<8x8xf32>
    %51 = arith.truncf %50 : vector<8x8xf32> to vector<8x8xbf16>
    %cst_20 = arith.constant dense<0.000000e+00> : vector<8x16xf32>
    %52 = tpu.matmul %51, %37, %cst_20 {dimension_numbers = #tpu.dot_dimension_numbers<[1], [0], [0], [1], [0, 0, 1, 1], [], []>} : vector<8x8xbf16>, vector<8x16xbf16>, vector<8x16xf32> -> vector<8x16xf32>
    %53 = arith.truncf %52 : vector<8x16xf32> to vector<8x16xbf16>
    %c0_21 = arith.constant 0 : index
    %c16 = arith.constant 16 : index
    %54 = vector.load %arg21[%c0_21, %c16] : memref<8x32xbf16, #tpu.memory_space<vmem>>, vector<8x16xbf16>
    tpu.vector_store %arg21[%c0_21, %c16], %53 {strides = array<i32>} : memref<8x32xbf16, #tpu.memory_space<vmem>>, vector<8x16xbf16>,
    %c0_22 = arith.constant 0 : index
    %c0_23 = arith.constant 0 : index
    %55 = vector.load %arg21[%c0_22, %c0_23] : memref<8x32xbf16, #tpu.memory_space<vmem>>, vector<8x32xbf16>
    %c0_24 = arith.constant 0 : index
    %c0_25 = arith.constant 0 : index
    %c0_26 = arith.constant 0 : index
    %56 = vector.load %arg9[%c0_24, %c0_25, %c0_26] : memref<1x32x32xbf16, #tpu.memory_space<vmem>>, vector<1x32x32xbf16>
    %57 = vector.shape_cast %56 : vector<1x32x32xbf16> to vector<32x32xbf16>
    %cst_27 = arith.constant dense<0.000000e+00> : vector<8x32xf32>
    %58 = tpu.matmul %55, %57, %cst_27 {dimension_numbers = #tpu.dot_dimension_numbers<[1], [0], [0], [1], [0, 0, 1, 1], [], []>} : vector<8x32xbf16>, vector<32x32xbf16>, vector<8x32xf32> -> vector<8x32xf32>
    %c0_28 = arith.constant 0 : index
    %c0_29 = arith.constant 0 : index
    %c0_30 = arith.constant 0 : index
    %59 = vector.load %arg10[%c0_28, %c0_29, %c0_30] : memref<1x1x32xf32, #tpu.memory_space<vmem>>, vector<1x1x32xf32>
    %60 = vector.shape_cast %59 : vector<1x1x32xf32> to vector<1x32xf32>
    %61 = vector.broadcast %60 : vector<1x32xf32> to vector<8x32xf32>
    %62 = arith.addf %58, %61 : vector<8x32xf32>
    %63 = arith.addf %3, %62 : vector<8x32xf32>
    %c0_31 = arith.constant 0 : index
    %c0_32 = arith.constant 0 : index
    %c0_33 = arith.constant 0 : index
    %64 = vector.load %arg11[%c0_31, %c0_32, %c0_33] : memref<1x1x32xf32, #tpu.memory_space<vmem>>, vector<1x1x32xf32>
    %65 = vector.shape_cast %64 : vector<1x1x32xf32> to vector<1x32xf32>
    %c0_34 = arith.constant 0 : index
    %c0_35 = arith.constant 0 : index
    %c0_36 = arith.constant 0 : index
    %66 = vector.load %arg12[%c0_34, %c0_35, %c0_36] : memref<1x1x32xf32, #tpu.memory_space<vmem>>, vector<1x1x32xf32>
    %67 = vector.shape_cast %66 : vector<1x1x32xf32> to vector<1x32xf32>
    %cst_37 = arith.constant dense<0.000000e+00> : vector<8xf32>
    %68 = vector.multi_reduction <add>, %63, %cst_37 [1] : vector<8x32xf32> to vector<8xf32>
    %69 = vector.shape_cast %68 : vector<8xf32> to vector<8x1xf32>
    %cst_38 = arith.constant 3.200000e+01 : f32
    %70 = vector.broadcast %cst_38 : f32 to vector<8x1xf32>
    %71 = arith.divf %69, %70 : vector<8x1xf32>
    %72 = vector.broadcast %71 : vector<8x1xf32> to vector<8x32xf32>
    %73 = arith.subf %63, %72 : vector<8x32xf32>
    %74 = arith.mulf %73, %73 : vector<8x32xf32>
    %cst_39 = arith.constant dense<0.000000e+00> : vector<8xf32>
    %75 = vector.multi_reduction <add>, %74, %cst_39 [1] : vector<8x32xf32> to vector<8xf32>
    %76 = vector.shape_cast %75 : vector<8xf32> to vector<8x1xf32>
    %cst_40 = arith.constant 3.200000e+01 : f32
    %77 = vector.broadcast %cst_40 : f32 to vector<8x1xf32>
    %78 = arith.divf %76, %77 : vector<8x1xf32>
    %79 = vector.broadcast %71 : vector<8x1xf32> to vector<8x32xf32>
    %80 = arith.subf %63, %79 : vector<8x32xf32>
    %cst_41 = arith.constant 9.99999996E-13 : f32
    %81 = vector.broadcast %cst_41 : f32 to vector<8x1xf32>
    %82 = arith.addf %78, %81 : vector<8x1xf32>
    %83 = math.rsqrt %82 : vector<8x1xf32>
    %84 = vector.broadcast %83 : vector<8x1xf32> to vector<8x32xf32>
    %85 = arith.mulf %80, %84 : vector<8x32xf32>
    %86 = vector.broadcast %65 : vector<1x32xf32> to vector<8x32xf32>
    %87 = arith.mulf %85, %86 : vector<8x32xf32>
    %88 = vector.broadcast %67 : vector<1x32xf32> to vector<8x32xf32>
    %89 = arith.addf %87, %88 : vector<8x32xf32>
    %90 = arith.truncf %89 : vector<8x32xf32> to vector<8x32xbf16>
    %c0_42 = arith.constant 0 : index
    %c0_43 = arith.constant 0 : index
    %c0_44 = arith.constant 0 : index
    %91 = vector.load %arg13[%c0_42, %c0_43, %c0_44] : memref<1x32x128xbf16, #tpu.memory_space<vmem>>, vector<1x32x128xbf16>
    %92 = vector.shape_cast %91 : vector<1x32x128xbf16> to vector<32x128xbf16>
    %cst_45 = arith.constant dense<0.000000e+00> : vector<8x128xf32>
    %93 = tpu.matmul %90, %92, %cst_45 {dimension_numbers = #tpu.dot_dimension_numbers<[1], [0], [0], [1], [0, 0, 1, 1], [], []>} : vector<8x32xbf16>, vector<32x128xbf16>, vector<8x128xf32> -> vector<8x128xf32>
    %c0_46 = arith.constant 0 : index
    %c0_47 = arith.constant 0 : index
    %c0_48 = arith.constant 0 : index
    %94 = vector.load %arg14[%c0_46, %c0_47, %c0_48] : memref<1x1x128xf32, #tpu.memory_space<vmem>>, vector<1x1x128xf32>
    %95 = vector.shape_cast %94 : vector<1x1x128xf32> to vector<1x128xf32>
    %96 = vector.broadcast %95 : vector<1x128xf32> to vector<8x128xf32>
    %97 = arith.addf %93, %96 : vector<8x128xf32>
    %cst_49 = arith.constant 5.000000e-01 : f32
    %98 = vector.broadcast %cst_49 : f32 to vector<8x128xf32>
    %99 = arith.mulf %98, %97 : vector<8x128xf32>
    %cst_50 = arith.constant 0.707106769 : f32
    %100 = vector.broadcast %cst_50 : f32 to vector<8x128xf32>
    %101 = arith.mulf %97, %100 : vector<8x128xf32>
    %102 = math.erf %101 : vector<8x128xf32>
    %cst_51 = arith.constant 1.000000e+00 : f32
    %103 = vector.broadcast %cst_51 : f32 to vector<8x128xf32>
    %104 = arith.addf %103, %102 : vector<8x128xf32>
    %105 = arith.mulf %99, %104 : vector<8x128xf32>
    %106 = arith.truncf %105 : vector<8x128xf32> to vector<8x128xbf16>
    %c0_52 = arith.constant 0 : index
    %c0_53 = arith.constant 0 : index
    %c0_54 = arith.constant 0 : index
    %107 = vector.load %arg15[%c0_52, %c0_53, %c0_54] : memref<1x128x32xbf16, #tpu.memory_space<vmem>>, vector<1x128x32xbf16>
    %108 = vector.shape_cast %107 : vector<1x128x32xbf16> to vector<128x32xbf16>
    %cst_55 = arith.constant dense<0.000000e+00> : vector<8x32xf32>
    %109 = tpu.matmul %106, %108, %cst_55 {dimension_numbers = #tpu.dot_dimension_numbers<[1], [0], [0], [1], [0, 0, 1, 1], [], []>} : vector<8x128xbf16>, vector<128x32xbf16>, vector<8x32xf32> -> vector<8x32xf32>
    %c0_56 = arith.constant 0 : index
    %c0_57 = arith.constant 0 : index
    %c0_58 = arith.constant 0 : index
    %110 = vector.load %arg16[%c0_56, %c0_57, %c0_58] : memref<1x1x32xf32, #tpu.memory_space<vmem>>, vector<1x1x32xf32>
    %111 = vector.shape_cast %110 : vector<1x1x32xf32> to vector<1x32xf32>
    %112 = vector.broadcast %111 : vector<1x32xf32> to vector<8x32xf32>
    %113 = arith.addf %109, %112 : vector<8x32xf32>
    %114 = arith.addf %89, %113 : vector<8x32xf32>
    %c0_59 = arith.constant 0 : index
    %c0_60 = arith.constant 0 : index
    %c0_61 = arith.constant 0 : index
    %115 = vector.load %arg17[%c0_59, %c0_60, %c0_61] : memref<1x1x32xf32, #tpu.memory_space<vmem>>, vector<1x1x32xf32>
    %116 = vector.shape_cast %115 : vector<1x1x32xf32> to vector<1x32xf32>
    %c0_62 = arith.constant 0 : index
    %c0_63 = arith.constant 0 : index
    %c0_64 = arith.constant 0 : index
    %117 = vector.load %arg18[%c0_62, %c0_63, %c0_64] : memref<1x1x32xf32, #tpu.memory_space<vmem>>, vector<1x1x32xf32>
    %118 = vector.shape_cast %117 : vector<1x1x32xf32> to vector<1x32xf32>
    %cst_65 = arith.constant dense<0.000000e+00> : vector<8xf32>
    %119 = vector.multi_reduction <add>, %114, %cst_65 [1] : vector<8x32xf32> to vector<8xf32>
    %120 = vector.shape_cast %119 : vector<8xf32> to vector<8x1xf32>
    %cst_66 = arith.constant 3.200000e+01 : f32
    %121 = vector.broadcast %cst_66 : f32 to vector<8x1xf32>
    %122 = arith.divf %120, %121 : vector<8x1xf32>
    %123 = vector.broadcast %122 : vector<8x1xf32> to vector<8x32xf32>
    %124 = arith.subf %114, %123 : vector<8x32xf32>
    %125 = arith.mulf %124, %124 : vector<8x32xf32>
    %cst_67 = arith.constant dense<0.000000e+00> : vector<8xf32>
    %126 = vector.multi_reduction <add>, %125, %cst_67 [1] : vector<8x32xf32> to vector<8xf32>
    %127 = vector.shape_cast %126 : vector<8xf32> to vector<8x1xf32>
    %cst_68 = arith.constant 3.200000e+01 : f32
    %128 = vector.broadcast %cst_68 : f32 to vector<8x1xf32>
    %129 = arith.divf %127, %128 : vector<8x1xf32>
    %130 = vector.broadcast %122 : vector<8x1xf32> to vector<8x32xf32>
    %131 = arith.subf %114, %130 : vector<8x32xf32>
    %cst_69 = arith.constant 9.99999996E-13 : f32
    %132 = vector.broadcast %cst_69 : f32 to vector<8x1xf32>
    %133 = arith.addf %129, %132 : vector<8x1xf32>
    %134 = math.rsqrt %133 : vector<8x1xf32>
    %135 = vector.broadcast %134 : vector<8x1xf32> to vector<8x32xf32>
    %136 = arith.mulf %131, %135 : vector<8x32xf32>
    %137 = vector.broadcast %116 : vector<1x32xf32> to vector<8x32xf32>
    %138 = arith.mulf %136, %137 : vector<8x32xf32>
    %139 = vector.broadcast %118 : vector<1x32xf32> to vector<8x32xf32>
    %140 = arith.addf %138, %139 : vector<8x32xf32>
    %c0_70 = arith.constant 0 : index
    %c0_71 = arith.constant 0 : index
    %141 = vector.load %arg20[%c0_70, %c0_71] : memref<8x32xf32, #tpu.memory_space<vmem>>, vector<8x32xf32>
    tpu.vector_store %arg20[%c0_70, %c0_71], %140 {strides = array<i32>} : memref<8x32xf32, #tpu.memory_space<vmem>>, vector<8x32xf32>,
    %c1_i32 = arith.constant 1 : i32
    %142 = arith.cmpi eq, %arg1, %c1_i32 : i32
    %143 = arith.extui %142 : i1 to i32
    %c0_i32_72 = arith.constant 0 : i32
    %144 = arith.cmpi ne, %143, %c0_i32_72 : i32
    scf.if %144 {
      %cst_73 = arith.constant dense<0.000000e+00> : vector<32xf32>
      %145 = vector.multi_reduction <add>, %140, %cst_73 [0] : vector<8x32xf32> to vector<32xf32>
      %146 = vector.shape_cast %145 : vector<32xf32> to vector<1x32xf32>
      %cst_74 = arith.constant 8.000000e+00 : f32
      %147 = vector.broadcast %cst_74 : f32 to vector<1x32xf32>
      %148 = arith.divf %146, %147 : vector<1x32xf32>
      %c0_75 = arith.constant 0 : index
      %c0_76 = arith.constant 0 : index
      %c0_77 = arith.constant 0 : index
      %149 = vector.load %arg19[%c0_75, %c0_76, %c0_77] : memref<1x1x32xf32, #tpu.memory_space<vmem>>, vector<1x1x32xf32>
      %150 = vector.shape_cast %149 : vector<1x1x32xf32> to vector<1x32xf32>
      %151 = vector.shape_cast %148 : vector<1x32xf32> to vector<1x1x32xf32>
      tpu.vector_store %arg19[%c0_75, %c0_76, %c0_77], %151 {strides = array<i32>} : memref<1x1x32xf32, #tpu.memory_space<vmem>>, vector<1x1x32xf32>,
    } else {
    }
    return
  }
  func.func @transform_0(%arg0: i32, %arg1: i32) -> (i32, i32, i32) {
    %c0_i32 = arith.constant 0 : i32
    %c0_i32_0 = arith.constant 0 : i32
    %c0_i32_1 = arith.constant 0 : i32
    return %arg0, %c0_i32, %c0_i32_0 : i32, i32, i32
  }
  func.func @transform_1(%arg0: i32, %arg1: i32) -> (i32, i32) {
    %c0_i32 = arith.constant 0 : i32
    %c0_i32_0 = arith.constant 0 : i32
    %c0_i32_1 = arith.constant 0 : i32
    return %c0_i32, %c0_i32_0 : i32, i32
  }
  func.func @transform_2(%arg0: i32, %arg1: i32) -> (i32, i32) {
    %c0_i32 = arith.constant 0 : i32
    %c0_i32_0 = arith.constant 0 : i32
    %c0_i32_1 = arith.constant 0 : i32
    return %c0_i32, %c0_i32_0 : i32, i32
  }
  func.func @transform_3(%arg0: i32, %arg1: i32) -> (i32, i32) {
    %c0_i32 = arith.constant 0 : i32
    %c0_i32_0 = arith.constant 0 : i32
    %c0_i32_1 = arith.constant 0 : i32
    return %c0_i32, %c0_i32_0 : i32, i32
  }
  func.func @transform_4(%arg0: i32, %arg1: i32) -> (i32, i32, i32) {
    %c0_i32 = arith.constant 0 : i32
    %c0_i32_0 = arith.constant 0 : i32
    %c0_i32_1 = arith.constant 0 : i32
    return %arg0, %c0_i32, %c0_i32_0 : i32, i32, i32
  }
  func.func @transform_5(%arg0: i32, %arg1: i32) -> (i32, i32, i32) {
    %c0_i32 = arith.constant 0 : i32
    %c0_i32_0 = arith.constant 0 : i32
    %c0_i32_1 = arith.constant 0 : i32
    return %arg1, %c0_i32, %c0_i32_0 : i32, i32, i32
  }
  func.func @transform_6(%arg0: i32, %arg1: i32) -> (i32, i32, i32) {
    %c0_i32 = arith.constant 0 : i32
    %c0_i32_0 = arith.constant 0 : i32
    %c0_i32_1 = arith.constant 0 : i32
    return %arg1, %c0_i32, %c0_i32_0 : i32, i32, i32
  }
  func.func @transform_7(%arg0: i32, %arg1: i32) -> (i32, i32, i32) {
    %c0_i32 = arith.constant 0 : i32
    %c0_i32_0 = arith.constant 0 : i32
    %c0_i32_1 = arith.constant 0 : i32
    return %arg1, %c0_i32, %c0_i32_0 : i32, i32, i32
  }
  func.func @transform_8(%arg0: i32, %arg1: i32) -> (i32, i32, i32) {
    %c0_i32 = arith.constant 0 : i32
    %c0_i32_0 = arith.constant 0 : i32
    %c0_i32_1 = arith.constant 0 : i32
    return %arg1, %c0_i32, %c0_i32_0 : i32, i32, i32
  }
  func.func @transform_9(%arg0: i32, %arg1: i32) -> (i32, i32, i32) {
    %c0_i32 = arith.constant 0 : i32
    %c0_i32_0 = arith.constant 0 : i32
    %c0_i32_1 = arith.constant 0 : i32
    return %arg1, %c0_i32, %c0_i32_0 : i32, i32, i32
  }
  func.func @transform_10(%arg0: i32, %arg1: i32) -> (i32, i32, i32) {
    %c0_i32 = arith.constant 0 : i32
    %c0_i32_0 = arith.constant 0 : i32
    %c0_i32_1 = arith.constant 0 : i32
    return %arg1, %c0_i32, %c0_i32_0 : i32, i32, i32
  }
  func.func @transform_11(%arg0: i32, %arg1: i32) -> (i32, i32, i32) {
    %c0_i32 = arith.constant 0 : i32
    %c0_i32_0 = arith.constant 0 : i32
    %c0_i32_1 = arith.constant 0 : i32
    return %arg1, %c0_i32, %c0_i32_0 : i32, i32, i32
  }
  func.func @transform_12(%arg0: i32, %arg1: i32) -> (i32, i32, i32) {
    %c0_i32 = arith.constant 0 : i32
    %c0_i32_0 = arith.constant 0 : i32
    %c0_i32_1 = arith.constant 0 : i32
    return %arg1, %c0_i32, %c0_i32_0 : i32, i32, i32
  }
  func.func @transform_13(%arg0: i32, %arg1: i32) -> (i32, i32, i32) {
    %c0_i32 = arith.constant 0 : i32
    %c0_i32_0 = arith.constant 0 : i32
    %c0_i32_1 = arith.constant 0 : i32
    return %arg1, %c0_i32, %c0_i32_0 : i32, i32, i32
  }
  func.func @transform_14(%arg0: i32, %arg1: i32) -> (i32, i32, i32) {
    %c0_i32 = arith.constant 0 : i32
    %c0_i32_0 = arith.constant 0 : i32
    %c0_i32_1 = arith.constant 0 : i32
    return %arg1, %c0_i32, %c0_i32_0 : i32, i32, i32
  }
  func.func @transform_15(%arg0: i32, %arg1: i32) -> (i32, i32, i32) {
    %c0_i32 = arith.constant 0 : i32
    %c0_i32_0 = arith.constant 0 : i32
    %c0_i32_1 = arith.constant 0 : i32
    return %arg1, %c0_i32, %c0_i32_0 : i32, i32, i32
  }
  func.func @transform_16(%arg0: i32, %arg1: i32) -> (i32, i32, i32) {
    %c0_i32 = arith.constant 0 : i32
    %c0_i32_0 = arith.constant 0 : i32
    %c0_i32_1 = arith.constant 0 : i32
    return %arg1, %c0_i32, %c0_i32_0 : i32, i32, i32
  }
  func.func @transform_17(%arg0: i32, %arg1: i32) -> (i32, i32, i32) {
    %c0_i32 = arith.constant 0 : i32
    %c0_i32_0 = arith.constant 0 : i32
    %c0_i32_1 = arith.constant 0 : i32
    return %arg0, %c0_i32, %c0_i32_0 : i32, i32, i32
  }
}

</mosaic_0001>

<llo_original>
// kernel: simcse_forward.1
$region0: #{simcse_forward.1}
  #allocation0 [shape = 'u32[]', space=smem, size = 0x4, offset = 0x4, fixed_abs, tag = 'smem constant byte address 0x4 - core index']
  #allocation1 [shape = 'u32[72,128]{1,0:T(1,128)}', space=vmem, size = 0x9000, scoped, tag = 'internal scratch']
  #allocation2 [shape = 'f32[8,32]{1,0:T(8,128)}', space=vmem, size = 0x1000, scoped, tag = 'scratch operand']
  #allocation3 [shape = 'bf16[8,32]{1,0:T(8,128)(2,1)}', space=vmem, size = 0x800, scoped, tag = 'scratch operand']
  %s0 = inlined_call_operand.vmem [shape: f32[2,8,32], index: 0, kind: input, shape index: {}]
  %s1 = inlined_call_operand.vmem [shape: f32[8,32], index: 1, kind: input, shape index: {}]
  %s2 = inlined_call_operand.vmem [shape: f32[1,32], index: 2, kind: input, shape index: {}]
  %s3 = inlined_call_operand.vmem [shape: f32[1,32], index: 3, kind: input, shape index: {}]
  %s4 = inlined_call_operand.vmem [shape: f32[2,1,8], index: 4, kind: input, shape index: {}]
  %s5 = inlined_call_operand.vmem [shape: bf16[2,32,96], index: 5, kind: input, shape index: {}]
  %s6 = inlined_call_operand.vmem [shape: f32[2,1,96], index: 6, kind: input, shape index: {}]
  %s7 = inlined_call_operand.vmem [shape: bf16[2,32,32], index: 7, kind: input, shape index: {}]
  %s8 = inlined_call_operand.vmem [shape: f32[2,1,32], index: 8, kind: input, shape index: {}]
  %s9 = inlined_call_operand.vmem [shape: f32[2,1,32], index: 9, kind: input, shape index: {}]
  %s10 = inlined_call_operand.vmem [shape: f32[2,1,32], index: 10, kind: input, shape index: {}]
  %s11 = inlined_call_operand.vmem [shape: bf16[2,32,128], index: 11, kind: input, shape index: {}]
  %s12 = inlined_call_operand.vmem [shape: f32[2,1,128], index: 12, kind: input, shape index: {}]
  %s13 = inlined_call_operand.vmem [shape: bf16[2,128,32], index: 13, kind: input, shape index: {}]
  %s14 = inlined_call_operand.vmem [shape: f32[2,1,32], index: 14, kind: input, shape index: {}]
  %s15 = inlined_call_operand.vmem [shape: f32[2,1,32], index: 15, kind: input, shape index: {}]
  %s16 = inlined_call_operand.vmem [shape: f32[2,1,32], index: 16, kind: input, shape index: {}]
  %s17 = inlined_call_operand.hbm [shape: f32[2,1,32], index: 17, kind: output, shape index: {}]
  %s18 = sld [smem:[#allocation0]]
  $region109: #{simcse_forward.1} parent=0
    _
  %s20 = ssub.s32 1, %s18
  %s21 = scalar_select 0, %s20, %s18
  $region1: #{simcse_forward.1} parent=0
    #allocation4 [shape = 'u8[1024]{0}', space=vmem, size = 0x400, scoped, tag = 'output window, operand 0']
    #allocation5 [shape = 's32[2]{0}', space=sflag, size = 0x8, scoped, tag = 'scoped memory for simcse_forward.1']
    %22 = vsyncpa [#allocation5], 0
    %s23 = scalar_lea.sflag [#allocation5], 1
    %24 = vsyncpa %s23, 0
    loop: start=0, step=1, limit=6
    $region2: #{simcse_forward.1} parent=1 // loop_pre_header
      _
    $region3: #{simcse_forward.1} parent=1 // loop_header
      %s26 = sphi 0, %s30
      %p27 = scmp.ge.s32.totalorder %s26, 6
      %s33 = sphi 0, %s45
      %s34 = sphi 0, %s41
      %s35 = sphi 0, %s33
      %s36 = sphi 0, %s34
      %s37 = sphi 0, %s35
      %s38 = sphi 0, %s36
      %s48 = sphi 0, %s50
      %s51 = sphi 0, %s48
      %s52 = sphi 0, %s51
      %s68 = sphi 0, %s52
      %s72 = sphi 0, %s72
      %s74 = sphi 0, %s72
      %s75 = sphi 0, %s74
      %s89 = sphi 0, %s75
      %s93 = sphi 0, %s93
      %s95 = sphi 0, %s93
      %s96 = sphi 0, %s95
      %s110 = sphi 0, %s96
      %s114 = sphi 0, %s114
      %s116 = sphi 0, %s114
      %s117 = sphi 0, %s116
      %s131 = sphi 0, %s117
      %s137 = sphi 0, %s139
      %s140 = sphi 0, %s137
      %s141 = sphi 0, %s140
      %s157 = sphi 0, %s141
      %s163 = sphi 0, %s165
      %s166 = sphi 0, %s163
      %s167 = sphi 0, %s166
      %s183 = sphi 0, %s167
      %s189 = sphi 0, %s191
      %s192 = sphi 0, %s189
      %s193 = sphi 0, %s192
      %s209 = sphi 0, %s193
      %s215 = sphi 0, %s217
      %s218 = sphi 0, %s215
      %s219 = sphi 0, %s218
      %s235 = sphi 0, %s219
      %s241 = sphi 0, %s243
      %s244 = sphi 0, %s241
      %s245 = sphi 0, %s244
      %s261 = sphi 0, %s245
      %s267 = sphi 0, %s269
      %s270 = sphi 0, %s267
      %s271 = sphi 0, %s270
      %s287 = sphi 0, %s271
      %s293 = sphi 0, %s295
      %s296 = sphi 0, %s293
      %s297 = sphi 0, %s296
      %s313 = sphi 0, %s297
      %s319 = sphi 0, %s321
      %s322 = sphi 0, %s319
      %s323 = sphi 0, %s322
      %s339 = sphi 0, %s323
      %s345 = sphi 0, %s347
      %s348 = sphi 0, %s345
      %s349 = sphi 0, %s348
      %s365 = sphi 0, %s349
      %s371 = sphi 0, %s373
      %s374 = sphi 0, %s371
      %s375 = sphi 0, %s374
      %s391 = sphi 0, %s375
      %s397 = sphi 0, %s399
      %s400 = sphi 0, %s397
      %s401 = sphi 0, %s400
      %s417 = sphi 0, %s401
      %s423 = sphi 0, %s425
      %s426 = sphi 0, %s423
      %s427 = sphi 0, %s426
      %s443 = sphi 0, %s427
      %s449 = sphi 0, %s451
      %s452 = sphi 0, %s449
      %s453 = sphi 0, %s452
      %s469 = sphi 0, %s453
      %s475 = sphi 0, %s477
      %s478 = sphi 0, %s475
      %s479 = sphi 0, %s478
      %s495 = sphi 0, %s479
    $region4: #{simcse_forward.1} parent=1 // loop_header_branch
      %29 = sbr.rel (%p27) target = $region8
    $region5: #{simcse_forward.1} parent=1 // loop_body
      %s31 = ssub.s32 %s26, 1
      %s32 = ssub.s32 %s26, 2
      %s39 = sadd.s32 1, %s34
      %p40 = scmp.ge.s32.totalorder %s39, 2
      %s41 = scalar_select %p40, 0, %s39
      %s42 = sadd.s32 1, %s33
      %s43 = scalar_select %p40, %s42, %s33
      %p44 = scmp.ge.s32.totalorder %s43, 2
      %s45 = scalar_select %p44, 0, %s43
      %s46 = ssub.s32 %s33, %s45
      %p47 = scmp.eq.s32.totalorder %s46, 0
      %s49 = sadd.s32 %s48, 1
      %s50 = scalar_select %p47, %s48, %s49
      %p53 = pneg %p47
      %p54 = scmp.eq.s32.totalorder %s26, 3
      %p55 = por %p53, %p54
      %p56 = scmp.ne.s32.totalorder %s48, %s51
      %p57 = scmp.eq.s32.totalorder %s26, 0
      %p58 = por %p56, %p57
      %p59 = scmp.ne.s32.totalorder %s48, %s51
      %p60 = scmp.eq.s32.totalorder %s31, 3
      %p61 = por %p59, %p60
      %p62 = scmp.ne.s32.totalorder %s51, %s52
      %p63 = scmp.eq.s32.totalorder %s31, 0
      %p64 = por %p62, %p63
      %p65 = scmp.ne.s32.totalorder %s51, %s52
      %p66 = scmp.eq.s32.totalorder %s32, 3
      %p67 = por %p65, %p66
      %p69 = scmp.ne.s32.totalorder %s52, %s68
      %p70 = scmp.eq.s32.totalorder %s32, 0
      %p71 = por %p69, %p70
      %s73 = sadd.s32 %s72, 1
      %p76 = scmp.eq.s32.totalorder %s26, 3
      %p77 = scmp.ne.s32.totalorder %s72, %s74
      %p78 = scmp.eq.s32.totalorder %s26, 0
      %p79 = por %p77, %p78
      %p80 = scmp.ne.s32.totalorder %s72, %s74
      %p81 = scmp.eq.s32.totalorder %s31, 3
      %p82 = por %p80, %p81
      %p83 = scmp.ne.s32.totalorder %s74, %s75
      %p84 = scmp.eq.s32.totalorder %s31, 0
      %p85 = por %p83, %p84
      %p86 = scmp.ne.s32.totalorder %s74, %s75
      %p87 = scmp.eq.s32.totalorder %s32, 3
      %p88 = por %p86, %p87
      %p90 = scmp.ne.s32.totalorder %s75, %s89
      %p91 = scmp.eq.s32.totalorder %s32, 0
      %p92 = por %p90, %p91
      %s94 = sadd.s32 %s93, 1
      %p97 = scmp.eq.s32.totalorder %s26, 3
      %p98 = scmp.ne.s32.totalorder %s93, %s95
      %p99 = scmp.eq.s32.totalorder %s26, 0
      %p100 = por %p98, %p99
      %p101 = scmp.ne.s32.totalorder %s93, %s95
      %p102 = scmp.eq.s32.totalorder %s31, 3
      %p103 = por %p101, %p102
      %p104 = scmp.ne.s32.totalorder %s95, %s96
      %p105 = scmp.eq.s32.totalorder %s31, 0
      %p106 = por %p104, %p105
      %p107 = scmp.ne.s32.totalorder %s95, %s96
      %p108 = scmp.eq.s32.totalorder %s32, 3
      %p109 = por %p107, %p108
      %p111 = scmp.ne.s32.totalorder %s96, %s110
      %p112 = scmp.eq.s32.totalorder %s32, 0
      %p113 = por %p111, %p112
      %s115 = sadd.s32 %s114, 1
      %p118 = scmp.eq.s32.totalorder %s26, 3
      %p119 = scmp.ne.s32.totalorder %s114, %s116
      %p120 = scmp.eq.s32.totalorder %s26, 0
      %p121 = por %p119, %p120
      %p122 = scmp.ne.s32.totalorder %s114, %s116
      %p123 = scmp.eq.s32.totalorder %s31, 3
      %p124 = por %p122, %p123
      %p125 = scmp.ne.s32.totalorder %s116, %s117
      %p126 = scmp.eq.s32.totalorder %s31, 0
      %p127 = por %p125, %p126
      %p128 = scmp.ne.s32.totalorder %s116, %s117
      %p129 = scmp.eq.s32.totalorder %s32, 3
      %p130 = por %p128, %p129
      %p132 = scmp.ne.s32.totalorder %s117, %s131
      %p133 = scmp.eq.s32.totalorder %s32, 0
      %p134 = por %p132, %p133
      %s135 = ssub.s32 %s33, %s45
      %p136 = scmp.eq.s32.totalorder %s135, 0
      %s138 = sadd.s32 %s137, 1
      %s139 = scalar_select %p136, %s137, %s138
      %p142 = pneg %p136
      %p143 = scmp.eq.s32.totalorder %s26, 3
      %p144 = por %p142, %p143
      %p145 = scmp.ne.s32.totalorder %s137, %s140
      %p146 = scmp.eq.s32.totalorder %s26, 0
      %p147 = por %p145, %p146
      %p148 = scmp.ne.s32.totalorder %s137, %s140
      %p149 = scmp.eq.s32.totalorder %s31, 3
      %p150 = por %p148, %p149
      %p151 = scmp.ne.s32.totalorder %s140, %s141
      %p152 = scmp.eq.s32.totalorder %s31, 0
      %p153 = por %p151, %p152
      %p154 = scmp.ne.s32.totalorder %s140, %s141
      %p155 = scmp.eq.s32.totalorder %s32, 3
      %p156 = por %p154, %p155
      %p158 = scmp.ne.s32.totalorder %s141, %s157
      %p159 = scmp.eq.s32.totalorder %s32, 0
      %p160 = por %p158, %p159
      %s161 = ssub.s32 %s34, %s41
      %p162 = scmp.eq.s32.totalorder %s161, 0
      %s164 = sadd.s32 %s163, 1
      %s165 = scalar_select %p162, %s163, %s164
      %p168 = pneg %p162
      %p169 = scmp.eq.s32.totalorder %s26, 3
      %p170 = por %p168, %p169
      %p171 = scmp.ne.s32.totalorder %s163, %s166
      %p172 = scmp.eq.s32.totalorder %s26, 0
      %p173 = por %p171, %p172
      %p174 = scmp.ne.s32.totalorder %s163, %s166
      %p175 = scmp.eq.s32.totalorder %s31, 3
      %p176 = por %p174, %p175
      %p177 = scmp.ne.s32.totalorder %s166, %s167
      %p178 = scmp.eq.s32.totalorder %s31, 0
      %p179 = por %p177, %p178
      %p180 = scmp.ne.s32.totalorder %s166, %s167
      %p181 = scmp.eq.s32.totalorder %s32, 3
      %p182 = por %p180, %p181
      %p184 = scmp.ne.s32.totalorder %s167, %s183
      %p185 = scmp.eq.s32.totalorder %s32, 0
      %p186 = por %p184, %p185
      %s187 = ssub.s32 %s34, %s41
      %p188 = scmp.eq.s32.totalorder %s187, 0
      %s190 = sadd.s32 %s189, 1
      %s191 = scalar_select %p188, %s189, %s190
      %p194 = pneg %p188
      %p195 = scmp.eq.s32.totalorder %s26, 3
      %p196 = por %p194, %p195
      %p197 = scmp.ne.s32.totalorder %s189, %s192
      %p198 = scmp.eq.s32.totalorder %s26, 0
      %p199 = por %p197, %p198
      %p200 = scmp.ne.s32.totalorder %s189, %s192
      %p201 = scmp.eq.s32.totalorder %s31, 3
      %p202 = por %p200, %p201
      %p203 = scmp.ne.s32.totalorder %s192, %s193
      %p204 = scmp.eq.s32.totalorder %s31, 0
      %p205 = por %p203, %p204
      %p206 = scmp.ne.s32.totalorder %s192, %s193
      %p207 = scmp.eq.s32.totalorder %s32, 3
      %p208 = por %p206, %p207
      %p210 = scmp.ne.s32.totalorder %s193, %s209
      %p211 = scmp.eq.s32.totalorder %s32, 0
      %p212 = por %p210, %p211
      %s213 = ssub.s32 %s34, %s41
      %p214 = scmp.eq.s32.totalorder %s213, 0
      %s216 = sadd.s32 %s215, 1
      %s217 = scalar_select %p214, %s215, %s216
      %p220 = pneg %p214
      %p221 = scmp.eq.s32.totalorder %s26, 3
      %p222 = por %p220, %p221
      %p223 = scmp.ne.s32.totalorder %s215, %s218
      %p224 = scmp.eq.s32.totalorder %s26, 0
      %p225 = por %p223, %p224
      %p226 = scmp.ne.s32.totalorder %s215, %s218
      %p227 = scmp.eq.s32.totalorder %s31, 3
      %p228 = por %p226, %p227
      %p229 = scmp.ne.s32.totalorder %s218, %s219
      %p230 = scmp.eq.s32.totalorder %s31, 0
      %p231 = por %p229, %p230
      %p232 = scmp.ne.s32.totalorder %s218, %s219
      %p233 = scmp.eq.s32.totalorder %s32, 3
      %p234 = por %p232, %p233
      %p236 = scmp.ne.s32.totalorder %s219, %s235
      %p237 = scmp.eq.s32.totalorder %s32, 0
      %p238 = por %p236, %p237
      %s239 = ssub.s32 %s34, %s41
      %p240 = scmp.eq.s32.totalorder %s239, 0
      %s242 = sadd.s32 %s241, 1
      %s243 = scalar_select %p240, %s241, %s242
      %p246 = pneg %p240
      %p247 = scmp.eq.s32.totalorder %s26, 3
      %p248 = por %p246, %p247
      %p249 = scmp.ne.s32.totalorder %s241, %s244
      %p250 = scmp.eq.s32.totalorder %s26, 0
      %p251 = por %p249, %p250
      %p252 = scmp.ne.s32.totalorder %s241, %s244
      %p253 = scmp.eq.s32.totalorder %s31, 3
      %p254 = por %p252, %p253
      %p255 = scmp.ne.s32.totalorder %s244, %s245
      %p256 = scmp.eq.s32.totalorder %s31, 0
      %p257 = por %p255, %p256
      %p258 = scmp.ne.s32.totalorder %s244, %s245
      %p259 = scmp.eq.s32.totalorder %s32, 3
      %p260 = por %p258, %p259
      %p262 = scmp.ne.s32.totalorder %s245, %s261
      %p263 = scmp.eq.s32.totalorder %s32, 0
      %p264 = por %p262, %p263
      %s265 = ssub.s32 %s34, %s41
      %p266 = scmp.eq.s32.totalorder %s265, 0
      %s268 = sadd.s32 %s267, 1
      %s269 = scalar_select %p266, %s267, %s268
      %p272 = pneg %p266
      %p273 = scmp.eq.s32.totalorder %s26, 3
      %p274 = por %p272, %p273
      %p275 = scmp.ne.s32.totalorder %s267, %s270
      %p276 = scmp.eq.s32.totalorder %s26, 0
      %p277 = por %p275, %p276
      %p278 = scmp.ne.s32.totalorder %s267, %s270
      %p279 = scmp.eq.s32.totalorder %s31, 3
      %p280 = por %p278, %p279
      %p281 = scmp.ne.s32.totalorder %s270, %s271
      %p282 = scmp.eq.s32.totalorder %s31, 0
      %p283 = por %p281, %p282
      %p284 = scmp.ne.s32.totalorder %s270, %s271
      %p285 = scmp.eq.s32.totalorder %s32, 3
      %p286 = por %p284, %p285
      %p288 = scmp.ne.s32.totalorder %s271, %s287
      %p289 = scmp.eq.s32.totalorder %s32, 0
      %p290 = por %p288, %p289
      %s291 = ssub.s32 %s34, %s41
      %p292 = scmp.eq.s32.totalorder %s291, 0
      %s294 = sadd.s32 %s293, 1
      %s295 = scalar_select %p292, %s293, %s294
      %p298 = pneg %p292
      %p299 = scmp.eq.s32.totalorder %s26, 3
      %p300 = por %p298, %p299
      %p301 = scmp.ne.s32.totalorder %s293, %s296
      %p302 = scmp.eq.s32.totalorder %s26, 0
      %p303 = por %p301, %p302
      %p304 = scmp.ne.s32.totalorder %s293, %s296
      %p305 = scmp.eq.s32.totalorder %s31, 3
      %p306 = por %p304, %p305
      %p307 = scmp.ne.s32.totalorder %s296, %s297
      %p308 = scmp.eq.s32.totalorder %s31, 0
      %p309 = por %p307, %p308
      %p310 = scmp.ne.s32.totalorder %s296, %s297
      %p311 = scmp.eq.s32.totalorder %s32, 3
      %p312 = por %p310, %p311
      %p314 = scmp.ne.s32.totalorder %s297, %s313
      %p315 = scmp.eq.s32.totalorder %s32, 0
      %p316 = por %p314, %p315
      %s317 = ssub.s32 %s34, %s41
      %p318 = scmp.eq.s32.totalorder %s317, 0
      %s320 = sadd.s32 %s319, 1
      %s321 = scalar_select %p318, %s319, %s320
      %p324 = pneg %p318
      %p325 = scmp.eq.s32.totalorder %s26, 3
      %p326 = por %p324, %p325
      %p327 = scmp.ne.s32.totalorder %s319, %s322
      %p328 = scmp.eq.s32.totalorder %s26, 0
      %p329 = por %p327, %p328
      %p330 = scmp.ne.s32.totalorder %s319, %s322
      %p331 = scmp.eq.s32.totalorder %s31, 3
      %p332 = por %p330, %p331
      %p333 = scmp.ne.s32.totalorder %s322, %s323
      %p334 = scmp.eq.s32.totalorder %s31, 0
      %p335 = por %p333, %p334
      %p336 = scmp.ne.s32.totalorder %s322, %s323
      %p337 = scmp.eq.s32.totalorder %s32, 3
      %p338 = por %p336, %p337
      %p340 = scmp.ne.s32.totalorder %s323, %s339
      %p341 = scmp.eq.s32.totalorder %s32, 0
      %p342 = por %p340, %p341
      %s343 = ssub.s32 %s34, %s41
      %p344 = scmp.eq.s32.totalorder %s343, 0
      %s346 = sadd.s32 %s345, 1
      %s347 = scalar_select %p344, %s345, %s346
      %p350 = pneg %p344
      %p351 = scmp.eq.s32.totalorder %s26, 3
      %p352 = por %p350, %p351
      %p353 = scmp.ne.s32.totalorder %s345, %s348
      %p354 = scmp.eq.s32.totalorder %s26, 0
      %p355 = por %p353, %p354
      %p356 = scmp.ne.s32.totalorder %s345, %s348
      %p357 = scmp.eq.s32.totalorder %s31, 3
      %p358 = por %p356, %p357
      %p359 = scmp.ne.s32.totalorder %s348, %s349
      %p360 = scmp.eq.s32.totalorder %s31, 0
      %p361 = por %p359, %p360
      %p362 = scmp.ne.s32.totalorder %s348, %s349
      %p363 = scmp.eq.s32.totalorder %s32, 3
      %p364 = por %p362, %p363
      %p366 = scmp.ne.s32.totalorder %s349, %s365
      %p367 = scmp.eq.s32.totalorder %s32, 0
      %p368 = por %p366, %p367
      %s369 = ssub.s32 %s34, %s41
      %p370 = scmp.eq.s32.totalorder %s369, 0
      %s372 = sadd.s32 %s371, 1
      %s373 = scalar_select %p370, %s371, %s372
      %p376 = pneg %p370
      %p377 = scmp.eq.s32.totalorder %s26, 3
      %p378 = por %p376, %p377
      %p379 = scmp.ne.s32.totalorder %s371, %s374
      %p380 = scmp.eq.s32.totalorder %s26, 0
      %p381 = por %p379, %p380
      %p382 = scmp.ne.s32.totalorder %s371, %s374
      %p383 = scmp.eq.s32.totalorder %s31, 3
      %p384 = por %p382, %p383
      %p385 = scmp.ne.s32.totalorder %s374, %s375
      %p386 = scmp.eq.s32.totalorder %s31, 0
      %p387 = por %p385, %p386
      %p388 = scmp.ne.s32.totalorder %s374, %s375
      %p389 = scmp.eq.s32.totalorder %s32, 3
      %p390 = por %p388, %p389
      %p392 = scmp.ne.s32.totalorder %s375, %s391
      %p393 = scmp.eq.s32.totalorder %s32, 0
      %p394 = por %p392, %p393
      %s395 = ssub.s32 %s34, %s41
      %p396 = scmp.eq.s32.totalorder %s395, 0
      %s398 = sadd.s32 %s397, 1
      %s399 = scalar_select %p396, %s397, %s398
      %p402 = pneg %p396
      %p403 = scmp.eq.s32.totalorder %s26, 3
      %p404 = por %p402, %p403
      %p405 = scmp.ne.s32.totalorder %s397, %s400
      %p406 = scmp.eq.s32.totalorder %s26, 0
      %p407 = por %p405, %p406
      %p408 = scmp.ne.s32.totalorder %s397, %s400
      %p409 = scmp.eq.s32.totalorder %s31, 3
      %p410 = por %p408, %p409
      %p411 = scmp.ne.s32.totalorder %s400, %s401
      %p412 = scmp.eq.s32.totalorder %s31, 0
      %p413 = por %p411, %p412
      %p414 = scmp.ne.s32.totalorder %s400, %s401
      %p415 = scmp.eq.s32.totalorder %s32, 3
      %p416 = por %p414, %p415
      %p418 = scmp.ne.s32.totalorder %s401, %s417
      %p419 = scmp.eq.s32.totalorder %s32, 0
      %p420 = por %p418, %p419
      %s421 = ssub.s32 %s34, %s41
      %p422 = scmp.eq.s32.totalorder %s421, 0
      %s424 = sadd.s32 %s423, 1
      %s425 = scalar_select %p422, %s423, %s424
      %p428 = pneg %p422
      %p429 = scmp.eq.s32.totalorder %s26, 3
      %p430 = por %p428, %p429
      %p431 = scmp.ne.s32.totalorder %s423, %s426
      %p432 = scmp.eq.s32.totalorder %s26, 0
      %p433 = por %p431, %p432
      %p434 = scmp.ne.s32.totalorder %s423, %s426
      %p435 = scmp.eq.s32.totalorder %s31, 3
      %p436 = por %p434, %p435
      %p437 = scmp.ne.s32.totalorder %s426, %s427
      %p438 = scmp.eq.s32.totalorder %s31, 0
      %p439 = por %p437, %p438
      %p440 = scmp.ne.s32.totalorder %s426, %s427
      %p441 = scmp.eq.s32.totalorder %s32, 3
      %p442 = por %p440, %p441
      %p444 = scmp.ne.s32.totalorder %s427, %s443
      %p445 = scmp.eq.s32.totalorder %s32, 0
      %p446 = por %p444, %p445
      %s447 = ssub.s32 %s34, %s41
      %p448 = scmp.eq.s32.totalorder %s447, 0
      %s450 = sadd.s32 %s449, 1
      %s451 = scalar_select %p448, %s449, %s450
      %p454 = pneg %p448
      %p455 = scmp.eq.s32.totalorder %s26, 3
      %p456 = por %p454, %p455
      %p457 = scmp.ne.s32.totalorder %s449, %s452
      %p458 = scmp.eq.s32.totalorder %s26, 0
      %p459 = por %p457, %p458
      %p460 = scmp.ne.s32.totalorder %s449, %s452
      %p461 = scmp.eq.s32.totalorder %s31, 3
      %p462 = por %p460, %p461
      %p463 = scmp.ne.s32.totalorder %s452, %s453
      %p464 = scmp.eq.s32.totalorder %s31, 0
      %p465 = por %p463, %p464
      %p466 = scmp.ne.s32.totalorder %s452, %s453
      %p467 = scmp.eq.s32.totalorder %s32, 3
      %p468 = por %p466, %p467
      %p470 = scmp.ne.s32.totalorder %s453, %s469
      %p471 = scmp.eq.s32.totalorder %s32, 0
      %p472 = por %p470, %p471
      %s473 = ssub.s32 %s33, %s45
      %p474 = scmp.eq.s32.totalorder %s473, 0
      %s476 = sadd.s32 %s475, 1
      %s477 = scalar_select %p474, %s475, %s476
      %p480 = pneg %p474
      %p481 = scmp.eq.s32.totalorder %s26, 3
      %p482 = por %p480, %p481
      %p483 = scmp.ne.s32.totalorder %s475, %s478
      %p484 = scmp.eq.s32.totalorder %s26, 0
      %p485 = por %p483, %p484
      %p486 = scmp.ne.s32.totalorder %s475, %s478
      %p487 = scmp.eq.s32.totalorder %s31, 3
      %p488 = por %p486, %p487
      %p489 = scmp.ne.s32.totalorder %s478, %s479
      %p490 = scmp.eq.s32.totalorder %s31, 0
      %p491 = por %p489, %p490
      %p492 = scmp.ne.s32.totalorder %s478, %s479
      %p493 = scmp.eq.s32.totalorder %s32, 3
      %p494 = por %p492, %p493
      %p496 = scmp.ne.s32.totalorder %s479, %s495
      %p497 = scmp.eq.s32.totalorder %s32, 0
      %p498 = por %p496, %p497
      %p499 = scmp.le.s32.totalorder 1, %s26
      %p500 = scmp.lt.s32.totalorder %s26, 5
      %p501 = pnand %p499, %p500
      %p502 = pneg %p501
      // Predicated region
      $region9: #{simcse_forward.1} parent=5 // pred_check
        _
      $region10: #{simcse_forward.1} parent=5 // pred_check_branch
        %504 = sbr.rel (%p501) target = $region12
      $region11: #{simcse_forward.1} parent=5 // pred_region
        %s505 = ssub.s32 %s26, 1
        // Predicated region
        $region13: #{simcse_forward.1} parent=11 // pred_check
          %p506 = pneg %p85
        $region14: #{simcse_forward.1} parent=11 // pred_check_branch
          %508 = sbr.rel (%p506) target = $region16
        $region15: #{simcse_forward.1} parent=11 // pred_region
          _
        $region16: #{simcse_forward.1} parent=11 // pred_fallthru
          _
        // Predicated region
        $region17: #{simcse_forward.1} parent=11 // pred_check
          %p509 = pneg %p106
        $region18: #{simcse_forward.1} parent=11 // pred_check_branch
          %511 = sbr.rel (%p509) target = $region20
        $region19: #{simcse_forward.1} parent=11 // pred_region
          _
        $region20: #{simcse_forward.1} parent=11 // pred_fallthru
          _
        // Predicated region
        $region21: #{simcse_forward.1} parent=11 // pred_check
          %p512 = pneg %p127
        $region22: #{simcse_forward.1} parent=11 // pred_check_branch
          %514 = sbr.rel (%p512) target = $region24
        $region23: #{simcse_forward.1} parent=11 // pred_region
          _
        $region24: #{simcse_forward.1} parent=11 // pred_fallthru
          _
      $region12: #{simcse_forward.1} parent=5 // pred_fallthru
        _
      %p515 = scmp.lt.s32.totalorder %s26, 4
      // Predicated region
      $region25: #{simcse_forward.1} parent=5 // pred_check
        %p516 = pneg %p515
      $region26: #{simcse_forward.1} parent=5 // pred_check_branch
        %518 = sbr.rel (%p516) target = $region28
      $region27: #{simcse_forward.1} parent=5 // pred_region
        // Predicated region
        $region29: #{simcse_forward.1} parent=27 // pred_check
          %p519 = pneg %p58
        $region30: #{simcse_forward.1} parent=27 // pred_check_branch
          %521 = sbr.rel (%p519) target = $region32
        $region31: #{simcse_forward.1} parent=27 // pred_region
          %p522 = scmp.lt.s32.totalorder %s33, 1
          %s523 = scalar_select %p522, %s33, 1
          %s524 = smul.addr %s523, 8
          %s525 = scalar_lea.vmem %s0, %s524
        $region32: #{simcse_forward.1} parent=27 // pred_fallthru
          _
        // Predicated region
        $region33: #{simcse_forward.1} parent=27 // pred_check
          %p526 = pneg %p147
        $region34: #{simcse_forward.1} parent=27 // pred_check_branch
          %528 = sbr.rel (%p526) target = $region36
        $region35: #{simcse_forward.1} parent=27 // pred_region
          %p529 = scmp.lt.s32.totalorder %s33, 1
          %s530 = scalar_select %p529, %s33, 1
          %s531 = scalar_lea.vmem %s4, %s530
        $region36: #{simcse_forward.1} parent=27 // pred_fallthru
          _
        // Predicated region
        $region37: #{simcse_forward.1} parent=27 // pred_check
          %p532 = pneg %p173
        $region38: #{simcse_forward.1} parent=27 // pred_check_branch
          %534 = sbr.rel (%p532) target = $region40
        $region39: #{simcse_forward.1} parent=27 // pred_region
          %p535 = scmp.lt.s32.totalorder %s34, 1
          %s536 = scalar_select %p535, %s34, 1
          %s537 = smul.addr %s536, 4
          %s538 = smul.addr %s537, 4
          %s539 = scalar_lea.vmem %s5, %s538
        $region40: #{simcse_forward.1} parent=27 // pred_fallthru
          _
        // Predicated region
        $region41: #{simcse_forward.1} parent=27 // pred_check
          %p540 = pneg %p199
        $region42: #{simcse_forward.1} parent=27 // pred_check_branch
          %542 = sbr.rel (%p540) target = $region44
        $region43: #{simcse_forward.1} parent=27 // pred_region
          %p543 = scmp.lt.s32.totalorder %s34, 1
          %s544 = scalar_select %p543, %s34, 1
          %s545 = scalar_lea.vmem %s6, %s544
        $region44: #{simcse_forward.1} parent=27 // pred_fallthru
          _
        // Predicated region
        $region45: #{simcse_forward.1} parent=27 // pred_check
          %p546 = pneg %p225
        $region46: #{simcse_forward.1} parent=27 // pred_check_branch
          %548 = sbr.rel (%p546) target = $region48
        $region47: #{simcse_forward.1} parent=27 // pred_region
          %p549 = scmp.lt.s32.totalorder %s34, 1
          %s550 = scalar_select %p549, %s34, 1
          %s551 = smul.addr %s550, 4
          %s552 = smul.addr %s551, 4
          %s553 = scalar_lea.vmem %s7, %s552
        $region48: #{simcse_forward.1} parent=27 // pred_fallthru
          _
        // Predicated region
        $region49: #{simcse_forward.1} parent=27 // pred_check
          %p554 = pneg %p251
        $region50: #{simcse_forward.1} parent=27 // pred_check_branch
          %556 = sbr.rel (%p554) target = $region52
        $region51: #{simcse_forward.1} parent=27 // pred_region
          %p557 = scmp.lt.s32.totalorder %s34, 1
          %s558 = scalar_select %p557, %s34, 1
          %s559 = scalar_lea.vmem %s8, %s558
        $region52: #{simcse_forward.1} parent=27 // pred_fallthru
          _
        // Predicated region
        $region53: #{simcse_forward.1} parent=27 // pred_check
          %p560 = pneg %p277
        $region54: #{simcse_forward.1} parent=27 // pred_check_branch
          %562 = sbr.rel (%p560) target = $region56
        $region55: #{simcse_forward.1} parent=27 // pred_region
          %p563 = scmp.lt.s32.totalorder %s34, 1
          %s564 = scalar_select %p563, %s34, 1
          %s565 = scalar_lea.vmem %s9, %s564
        $region56: #{simcse_forward.1} parent=27 // pred_fallthru
          _
        // Predicated region
        $region57: #{simcse_forward.1} parent=27 // pred_check
          %p566 = pneg %p303
        $region58: #{simcse_forward.1} parent=27 // pred_check_branch
          %568 = sbr.rel (%p566) target = $region60
        $region59: #{simcse_forward.1} parent=27 // pred_region
          %p569 = scmp.lt.s32.totalorder %s34, 1
          %s570 = scalar_select %p569, %s34, 1
          %s571 = scalar_lea.vmem %s10, %s570
        $region60: #{simcse_forward.1} parent=27 // pred_fallthru
          _
        // Predicated region
        $region61: #{simcse_forward.1} parent=27 // pred_check
          %p572 = pneg %p329
        $region62: #{simcse_forward.1} parent=27 // pred_check_branch
          %574 = sbr.rel (%p572) target = $region64
        $region63: #{simcse_forward.1} parent=27 // pred_region
          %p575 = scmp.lt.s32.totalorder %s34, 1
          %s576 = scalar_select %p575, %s34, 1
          %s577 = smul.addr %s576, 4
          %s578 = smul.addr %s577, 4
          %s579 = scalar_lea.vmem %s11, %s578
        $region64: #{simcse_forward.1} parent=27 // pred_fallthru
          _
        // Predicated region
        $region65: #{simcse_forward.1} parent=27 // pred_check
          %p580 = pneg %p355
        $region66: #{simcse_forward.1} parent=27 // pred_check_branch
          %582 = sbr.rel (%p580) target = $region68
        $region67: #{simcse_forward.1} parent=27 // pred_region
          %p583 = scmp.lt.s32.totalorder %s34, 1
          %s584 = scalar_select %p583, %s34, 1
          %s585 = scalar_lea.vmem %s12, %s584
        $region68: #{simcse_forward.1} parent=27 // pred_fallthru
          _
        // Predicated region
        $region69: #{simcse_forward.1} parent=27 // pred_check
          %p586 = pneg %p381
        $region70: #{simcse_forward.1} parent=27 // pred_check_branch
          %588 = sbr.rel (%p586) target = $region72
        $region71: #{simcse_forward.1} parent=27 // pred_region
          %p589 = scmp.lt.s32.totalorder %s34, 1
          %s590 = scalar_select %p589, %s34, 1
          %s591 = smul.addr %s590, 16
          %s592 = smul.addr %s591, 4
          %s593 = scalar_lea.vmem %s13, %s592
        $region72: #{simcse_forward.1} parent=27 // pred_fallthru
          _
        // Predicated region
        $region73: #{simcse_forward.1} parent=27 // pred_check
          %p594 = pneg %p407
        $region74: #{simcse_forward.1} parent=27 // pred_check_branch
          %596 = sbr.rel (%p594) target = $region76
        $region75: #{simcse_forward.1} parent=27 // pred_region
          %p597 = scmp.lt.s32.totalorder %s34, 1
          %s598 = scalar_select %p597, %s34, 1
          %s599 = scalar_lea.vmem %s14, %s598
        $region76: #{simcse_forward.1} parent=27 // pred_fallthru
          _
        // Predicated region
        $region77: #{simcse_forward.1} parent=27 // pred_check
          %p600 = pneg %p433
        $region78: #{simcse_forward.1} parent=27 // pred_check_branch
          %602 = sbr.rel (%p600) target = $region80
        $region79: #{simcse_forward.1} parent=27 // pred_region
          %p603 = scmp.lt.s32.totalorder %s34, 1
          %s604 = scalar_select %p603, %s34, 1
          %s605 = scalar_lea.vmem %s15, %s604
        $region80: #{simcse_forward.1} parent=27 // pred_fallthru
          _
        // Predicated region
        $region81: #{simcse_forward.1} parent=27 // pred_check
          %p606 = pneg %p459
        $region82: #{simcse_forward.1} parent=27 // pred_check_branch
          %608 = sbr.rel (%p606) target = $region84
        $region83: #{simcse_forward.1} parent=27 // pred_region
          %p609 = scmp.lt.s32.totalorder %s34, 1
          %s610 = scalar_select %p609, %s34, 1
          %s611 = scalar_lea.vmem %s16, %s610
        $region84: #{simcse_forward.1} parent=27 // pred_fallthru
          _
      $region28: #{simcse_forward.1} parent=5 // pred_fallthru
        _
      %p612 = scmp.le.s32.totalorder 1, %s26
      %p613 = scmp.lt.s32.totalorder %s26, 5
      %p614 = pnand %p612, %p613
      %p615 = pneg %p614
      // Predicated region
      $region85: #{simcse_forward.1} parent=5 // pred_check
        _
      $region86: #{simcse_forward.1} parent=5 // pred_check_branch
        %617 = sbr.rel (%p614) target = $region88
      $region87: #{simcse_forward.1} parent=5 // pred_region
        %s618 = ssub.s32 %s26, 1
        %p619 = scmp.lt.s32.totalorder %s35, 1
        %s620 = scalar_select %p619, %s35, 1
        %s621 = smul.addr %s620, 8
        %s622 = scalar_lea.vmem %s0, %s621
        %p623 = pneg %p64
        %p624 = pneg %p61
        %p625 = pneg %p85
        %p626 = pneg %p82
        %p627 = pneg %p106
        %p628 = pneg %p103
        %p629 = pneg %p127
        %p630 = pneg %p124
        %p631 = scmp.lt.s32.totalorder %s35, 1
        %s632 = scalar_select %p631, %s35, 1
        %s633 = scalar_lea.vmem %s4, %s632
        %p634 = pneg %p153
        %p635 = pneg %p150
        %p636 = scmp.lt.s32.totalorder %s36, 1
        %s637 = scalar_select %p636, %s36, 1
        %s638 = smul.addr %s637, 4
        %s639 = smul.addr %s638, 4
        %s640 = scalar_lea.vmem %s5, %s639
        %p641 = pneg %p179
        %p642 = pneg %p176
        %p643 = scmp.lt.s32.totalorder %s36, 1
        %s644 = scalar_select %p643, %s36, 1
        %s645 = scalar_lea.vmem %s6, %s644
        %p646 = pneg %p205
        %p647 = pneg %p202
        %p648 = scmp.lt.s32.totalorder %s36, 1
        %s649 = scalar_select %p648, %s36, 1
        %s650 = smul.addr %s649, 4
        %s651 = smul.addr %s650, 4
        %s652 = scalar_lea.vmem %s7, %s651
        %p653 = pneg %p231
        %p654 = pneg %p228
        %p655 = scmp.lt.s32.totalorder %s36, 1
        %s656 = scalar_select %p655, %s36, 1
        %s657 = scalar_lea.vmem %s8, %s656
        %p658 = pneg %p257
        %p659 = pneg %p254
        %p660 = scmp.lt.s32.totalorder %s36, 1
        %s661 = scalar_select %p660, %s36, 1
        %s662 = scalar_lea.vmem %s9, %s661
        %p663 = pneg %p283
        %p664 = pneg %p280
        %p665 = scmp.lt.s32.totalorder %s36, 1
        %s666 = scalar_select %p665, %s36, 1
        %s667 = scalar_lea.vmem %s10, %s666
        %p668 = pneg %p309
        %p669 = pneg %p306
        %p670 = scmp.lt.s32.totalorder %s36, 1
        %s671 = scalar_select %p670, %s36, 1
        %s672 = smul.addr %s671, 4
        %s673 = smul.addr %s672, 4
        %s674 = scalar_lea.vmem %s11, %s673
        %p675 = pneg %p335
        %p676 = pneg %p332
        %p677 = scmp.lt.s32.totalorder %s36, 1
        %s678 = scalar_select %p677, %s36, 1
        %s679 = scalar_lea.vmem %s12, %s678
        %p680 = pneg %p361
        %p681 = pneg %p358
        %p682 = scmp.lt.s32.totalorder %s36, 1
        %s683 = scalar_select %p682, %s36, 1
        %s684 = smul.addr %s683, 16
        %s685 = smul.addr %s684, 4
        %s686 = scalar_lea.vmem %s13, %s685
        %p687 = pneg %p387
        %p688 = pneg %p384
        %p689 = scmp.lt.s32.totalorder %s36, 1
        %s690 = scalar_select %p689, %s36, 1
        %s691 = scalar_lea.vmem %s14, %s690
        %p692 = pneg %p413
        %p693 = pneg %p410
        %p694 = scmp.lt.s32.totalorder %s36, 1
        %s695 = scalar_select %p694, %s36, 1
        %s696 = scalar_lea.vmem %s15, %s695
        %p697 = pneg %p439
        %p698 = pneg %p436
        %p699 = scmp.lt.s32.totalorder %s36, 1
        %s700 = scalar_select %p699, %s36, 1
        %s701 = scalar_lea.vmem %s16, %s700
        %p702 = pneg %p465
        %p703 = pneg %p462
        %p704 = pneg %p491
        %p705 = pneg %p488
        %s706 = sand.u32 %s478, 1
        %s707 = scalar_lea.sflag [#allocation5], %s706
        %s708 = sand.u32 %s478, 1
        %s709 = scalar_lea.vmem [#allocation4], %s708
        %p710 = scmp.lt.s32.totalorder %s35, 1
        %s711 = scalar_select %p710, %s35, 1
        %s712 = smul.addr %s711, 8
        %s713 = scalar_lea.vmem %s0, %s712
        %p714 = scmp.lt.s32.totalorder %s35, 1
        %s715 = scalar_select %p714, %s35, 1
        %s716 = scalar_lea.vmem %s4, %s715
        %p717 = scmp.lt.s32.totalorder %s36, 1
        %s718 = scalar_select %p717, %s36, 1
        %s719 = smul.addr %s718, 4
        %s720 = smul.addr %s719, 4
        %s721 = scalar_lea.vmem %s5, %s720
        %p722 = scmp.lt.s32.totalorder %s36, 1
        %s723 = scalar_select %p722, %s36, 1
        %s724 = scalar_lea.vmem %s6, %s723
        %p725 = scmp.lt.s32.totalorder %s36, 1
        %s726 = scalar_select %p725, %s36, 1
        %s727 = smul.addr %s726, 4
        %s728 = smul.addr %s727, 4
        %s729 = scalar_lea.vmem %s7, %s728
        %p730 = scmp.lt.s32.totalorder %s36, 1
        %s731 = scalar_select %p730, %s36, 1
        %s732 = scalar_lea.vmem %s8, %s731
        %p733 = scmp.lt.s32.totalorder %s36, 1
        %s734 = scalar_select %p733, %s36, 1
        %s735 = scalar_lea.vmem %s9, %s734
        %p736 = scmp.lt.s32.totalorder %s36, 1
        %s737 = scalar_select %p736, %s36, 1
        %s738 = scalar_lea.vmem %s10, %s737
        %p739 = scmp.lt.s32.totalorder %s36, 1
        %s740 = scalar_select %p739, %s36, 1
        %s741 = smul.addr %s740, 4
        %s742 = smul.addr %s741, 4
        %s743 = scalar_lea.vmem %s11, %s742
        %p744 = scmp.lt.s32.totalorder %s36, 1
        %s745 = scalar_select %p744, %s36, 1
        %s746 = scalar_lea.vmem %s12, %s745
        %p747 = scmp.lt.s32.totalorder %s36, 1
        %s748 = scalar_select %p747, %s36, 1
        %s749 = smul.addr %s748, 16
        %s750 = smul.addr %s749, 4
        %s751 = scalar_lea.vmem %s13, %s750
        %p752 = scmp.lt.s32.totalorder %s36, 1
        %s753 = scalar_select %p752, %s36, 1
        %s754 = scalar_lea.vmem %s14, %s753
        %p755 = scmp.lt.s32.totalorder %s36, 1
        %s756 = scalar_select %p755, %s36, 1
        %s757 = scalar_lea.vmem %s15, %s756
        %p758 = scmp.lt.s32.totalorder %s36, 1
        %s759 = scalar_select %p758, %s36, 1
        %s760 = scalar_lea.vmem %s16, %s759
        %p762 = scmp.eq.s32.totalorder %s36, 0
        // Predicated region
        $region89: #{simcse_forward.1} parent=87 // pred_check
          %p763 = pneg %p762
        $region90: #{simcse_forward.1} parent=87 // pred_check_branch
          %765 = sbr.rel (%p763) target = $region92
        $region91: #{simcse_forward.1} parent=87 // pred_region
          %v766 = vld [vmem:[%s713] sm:$0xff]
          %v767 = vld [vmem:[%s1] sm:$0xff]
          %v768 = vadd.f32 %v766, %v767
          %v769 = vld [vmem:[%s2] sm:$0x1]
          %v770 = vld [vmem:[%s3] sm:$0x1]
          %vm771 = vcmask 261120
          %v772 = vsel %vm771, %v768, 0.0
          %773 = vadd.xlane.f32.xlu0 %v772
          %v774 = vpop.xlane.xlu0 %773
          %v775 = vrcp.pop 32.0
          %v776 = vmul.f32 32.0, %v775
          %v777 = vsub.f32 1.0, %v776
          %v778 = vmul.f32 %v775, %v777
          %v779 = vadd.f32 %v775, %v778
          %vm780 = vweird.f32 %v775
          %v781 = vsel %vm780, %v775, %v779
          %v782 = vmul.f32 %v774, %v781
          %v783 = vsub.f32 %v768, %v782
          %v784 = vmul.f32 %v783, %v783
          %v785 = vsel %vm771, %v784, 0.0
          %786 = vadd.xlane.f32.xlu0 %v785
          %v787 = vpop.xlane.xlu0 %786
          %v788 = vmul.f32 %v787, %v781
          %v789 = vadd.f32 %v788, 1e-12
          %v790 = vrsqrt.pop %v789
          %v791 = vmul.f32 %v790, %v789
          %v792 = vmul.f32 %v791, %v790
          %v793 = vmul.f32 0.5, %v792
          %v794 = vsub.f32 1.5, %v793
          %v795 = vmul.f32 %v790, %v794
          %vm796 = vweird.f32 %v789
          %vm797 = vweird.f32 %v790
          %vm798 = vmor %vm796, %vm797
          %v799 = vsel %vm798, %v790, %v795
          %v800 = vmul.f32 %v783, %v799
          %v802 = vperm.slane %v769, 0
          %v804 = vmul.f32 %v800, %v802
          %v806 = vperm.slane %v770, 0
          %v808 = vadd.f32 %v804, %v806
          %809 = vst.msk [vmem:[#allocation2] sm:$0xff] %vm771, %v808
        $region92: #{simcse_forward.1} parent=87 // pred_fallthru
          _
        %v810 = vld [vmem:[#allocation2] sm:$0xff]
        %v811 = vpack.c.bf16 %v810, %v810
        %v812 = vld [vmem:[%s721] sm:$0xf]
        %v813 = vld [vmem:[%s721 + $0x4] sm:$0xf]
        %v814 = vld [vmem:[%s721 + $0x8] sm:$0xf]
        %v815 = vld [vmem:[%s721 + $0xc] sm:$0xf]
        %v816 = vld [vmem:[%s724] sm:$0x1]
        %v818 = vperm.slane %v816, 0
        %v824 = vunpack.c.l.b16 %v812
        %v825 = vunpack.c.l.b16 %v813
        %v826 = vunpack.c.l.b16 %v814
        %v827 = vunpack.c.l.b16 %v815
        %v828 = vpack.c.b16 %v825, %v824
        %v829 = vpack.c.b16 %v827, %v826
        %vm832 = vcmask 261120
        %v834 = vsel %vm832, %v811, 0
        %836 = vmatpush.bf16.msra.mxu0 0
        %837 = vmatpush.bf16.msra.mxu0 0
        %838 = vmatpush.bf16.msra.mxu0 0
        %839 = vmatpush.bf16.msra.mxu0 0
        %840 = vmatpush.bf16.msra.mxu0 0
        %841 = vmatpush.bf16.msra.mxu0 0
        %842 = vmatpush.bf16.msra.mxu0 %v829
        %843 = vmatpush.bf16.msra.mxu0 %v828
        %844 = vmatmul.bf16.gmra.mxu0 %v834
        %v845 = vpop.f32.mrf.mxu0
        %v846 = vadd.f32 %v818, %v845
        %v847 = vpop.f32.mrf.mxu0
        %848 = vdwg.mxu0
        %v849 = vpack.c.bf16 %v846, %v846
        %v850 = vld [vmem:[%s716] sm:$0x1]
        %v852 = vperm.slane %v850, 0
        %v855 = vunpack.c.l.b16 %v849
        %v856 = vpack.c.b16 %v855, %v855
        %857 = vrot.lane.b32.xlu0 %v856, 96
        %v858 = vpop.permute.xlu0 %857
        %vm859 = vcmask 130048
        %v861 = vsel %vm859, %v849, 0
        %v864 = vsel %vm859, %v858, 0
        %866 = vmatpush.bf16.xpose.msra.mxu0 0
        %867 = vmatpush.bf16.xpose.msra.mxu0 0
        %868 = vmatpush.bf16.xpose.msra.mxu0 0
        %869 = vmatpush.bf16.xpose.msra.mxu0 0
        %870 = vmatpush.bf16.xpose.msra.mxu0 0
        %871 = vmatpush.bf16.xpose.msra.mxu0 0
        %872 = vmatpush.bf16.xpose.msra.mxu0 0
        %873 = vmatpush.bf16.xpose.msra.mxu0 %v864
        %874 = vmatmul.bf16.gmra.mxu0 %v861
        %v875 = vpop.f32.mrf.mxu0
        %v876 = vadd.f32 %v852, %v875
        %v877 = vpop.f32.mrf.mxu0
        %878 = vdwg.mxu0
        %vm879 = vcmask 64512
        %v880 = vsel %vm879, %v876, -inf
        %881 = vmax.xlane.f32.xlu0 %v880
        %v882 = vpop.xlane.xlu0 %881
        %v883 = vsub.f32 %v876, %v882
        %v884 = vmul.f32 %v883, 1.442695
        %v885 = vpow.pop %v884
        %v886 = vsel %vm879, %v885, 0.0
        %887 = vadd.xlane.f32.xlu0 %v886
        %v888 = vpop.xlane.xlu0 %887
        %v889 = vrcp.pop %v888
        %v890 = vmul.f32 %v885, %v889
        %v891 = vpack.c.bf16 %v890, %v890
        %892 = vrot.lane.b32.xlu0 %v856, 64
        %v893 = vpop.permute.xlu0 %892
        %v895 = vsel %vm879, %v891, 0
        %vm897 = vcmask 1043456
        %v899 = vsel %vm897, %v893, 0
        %901 = vmatpush.bf16.msra.mxu0 0
        %902 = vmatpush.bf16.msra.mxu0 0
        %903 = vmatpush.bf16.msra.mxu0 0
        %904 = vmatpush.bf16.msra.mxu0 0
        %905 = vmatpush.bf16.msra.mxu0 0
        %906 = vmatpush.bf16.msra.mxu0 0
        %907 = vmatpush.bf16.msra.mxu0 0
        %908 = vmatpush.bf16.msra.mxu0 %v899
        %909 = vmatmul.bf16.gmra.mxu0 %v895
        %v910 = vpop.f32.mrf.mxu0
        %v911 = vadd.f32 0.0, %v910
        %v912 = vpop.f32.mrf.mxu0
        %913 = vdwg.mxu0
        %v914 = vpack.c.bf16 %v911, %v911
        %vm915 = vcmask 125952
        %916 = vst.msk [vmem:[#allocation3] sm:$0xf] %vm915, %v914
        %917 = vrot.lane.b32.xlu0 %v856, 112
        %v918 = vpop.permute.xlu0 %917
        %919 = vrot.lane.b32.xlu0 %v856, 80
        %v920 = vpop.permute.xlu0 %919
        %v922 = vsel %vm859, %v918, 0
        %v925 = vsel %vm859, %v920, 0
        %927 = vmatpush.bf16.xpose.msra.mxu0 0
        %928 = vmatpush.bf16.xpose.msra.mxu0 0
        %929 = vmatpush.bf16.xpose.msra.mxu0 0
        %930 = vmatpush.bf16.xpose.msra.mxu0 0
        %931 = vmatpush.bf16.xpose.msra.mxu0 0
        %932 = vmatpush.bf16.xpose.msra.mxu0 0
        %933 = vmatpush.bf16.xpose.msra.mxu0 0
        %934 = vmatpush.bf16.xpose.msra.mxu0 %v925
        %935 = vmatmul.bf16.gmra.mxu0 %v922
        %v936 = vpop.f32.mrf.mxu0
        %v937 = vadd.f32 %v852, %v936
        %v938 = vpop.f32.mrf.mxu0
        %939 = vdwg.mxu0
        %v940 = vsel %vm879, %v937, -inf
        %941 = vmax.xlane.f32.xlu0 %v940
        %v942 = vpop.xlane.xlu0 %941
        %v943 = vsub.f32 %v937, %v942
        %v944 = vmul.f32 %v943, 1.442695
        %v945 = vpow.pop %v944
        %v946 = vsel %vm879, %v945, 0.0
        %947 = vadd.xlane.f32.xlu0 %v946
        %v948 = vpop.xlane.xlu0 %947
        %v949 = vrcp.pop %v948
        %v950 = vmul.f32 %v945, %v949
        %v951 = vpack.c.bf16 %v950, %v950
        %952 = vrot.lane.b32.xlu0 %v856, 48
        %v953 = vpop.permute.xlu0 %952
        %v955 = vsel %vm879, %v951, 0
        %v958 = vsel %vm897, %v953, 0
        %960 = vmatpush.bf16.msra.mxu0 0
        %961 = vmatpush.bf16.msra.mxu0 0
        %962 = vmatpush.bf16.msra.mxu0 0
        %963 = vmatpush.bf16.msra.mxu0 0
        %964 = vmatpush.bf16.msra.mxu0 0
        %965 = vmatpush.bf16.msra.mxu0 0
        %966 = vmatpush.bf16.msra.mxu0 0
        %967 = vmatpush.bf16.msra.mxu0 %v958
        %968 = vmatmul.bf16.gmra.mxu0 %v955
        %v969 = vpop.f32.mrf.mxu0
        %v970 = vadd.f32 0.0, %v969
        %v971 = vpop.f32.mrf.mxu0
        %972 = vdwg.mxu0
        %v973 = vpack.c.bf16 %v970, %v970
        %975 = vrot.lane.b32.xlu0 %v973, 16
        %v976 = vpop.permute.xlu0 %975
        %vm978 = vcmask 257152
        %979 = vst.msk [vmem:[#allocation3] sm:$0xf] %vm978, %v976
        %v980 = vld [vmem:[#allocation3] sm:$0xf]
        %v981 = vld [vmem:[%s729] sm:$0xf]
        %v982 = vld [vmem:[%s729 + $0x4] sm:$0xf]
        %v983 = vld [vmem:[%s729 + $0x8] sm:$0xf]
        %v984 = vld [vmem:[%s729 + $0xc] sm:$0xf]
        %v985 = vld [vmem:[%s732] sm:$0x1]
        %v987 = vperm.slane %v985, 0
        %v993 = vunpack.c.l.b16 %v981
        %v994 = vunpack.c.l.b16 %v982
        %v995 = vunpack.c.l.b16 %v983
        %v996 = vunpack.c.l.b16 %v984
        %v997 = vpack.c.b16 %v994, %v993
        %v998 = vpack.c.b16 %v996, %v995
        %v1002 = vsel %vm832, %v980, 0
        %1004 = vmatpush.bf16.msra.mxu0 0
        %1005 = vmatpush.bf16.msra.mxu0 0
        %1006 = vmatpush.bf16.msra.mxu0 0
        %1007 = vmatpush.bf16.msra.mxu0 0
        %1008 = vmatpush.bf16.msra.mxu0 0
        %1009 = vmatpush.bf16.msra.mxu0 0
        %1010 = vmatpush.bf16.msra.mxu0 %v998
        %1011 = vmatpush.bf16.msra.mxu0 %v997
        %1012 = vmatmul.bf16.gmra.mxu0 %v1002
        %v1013 = vpop.f32.mrf.mxu0
        %v1014 = vadd.f32 %v987, %v1013
        %v1015 = vpop.f32.mrf.mxu0
        %1016 = vdwg.mxu0
        %v1017 = vadd.f32 %v810, %v1014
        %v1018 = vld [vmem:[%s735] sm:$0x1]
        %v1019 = vld [vmem:[%s738] sm:$0x1]
        %v1020 = vsel %vm832, %v1017, 0.0
        %1021 = vadd.xlane.f32.xlu0 %v1020
        %v1022 = vpop.xlane.xlu0 %1021
        %v1023 = vrcp.pop 32.0
        %v1024 = vmul.f32 32.0, %v1023
        %v1025 = vsub.f32 1.0, %v1024
        %v1026 = vmul.f32 %v1023, %v1025
        %v1027 = vadd.f32 %v1023, %v1026
        %vm1028 = vweird.f32 %v1023
        %v1029 = vsel %vm1028, %v1023, %v1027
        %v1030 = vmul.f32 %v1022, %v1029
        %v1031 = vsub.f32 %v1017, %v1030
        %v1032 = vmul.f32 %v1031, %v1031
        %v1033 = vsel %vm832, %v1032, 0.0
        %1034 = vadd.xlane.f32.xlu0 %v1033
        %v1035 = vpop.xlane.xlu0 %1034
        %v1036 = vmul.f32 %v1035, %v1029
        %v1037 = vadd.f32 %v1036, 1e-12
        %v1038 = vrsqrt.pop %v1037
        %v1039 = vmul.f32 %v1038, %v1037
        %v1040 = vmul.f32 %v1039, %v1038
        %v1041 = vmul.f32 0.5, %v1040
        %v1042 = vsub.f32 1.5, %v1041
        %v1043 = vmul.f32 %v1038, %v1042
        %vm1044 = vweird.f32 %v1037
        %vm1045 = vweird.f32 %v1038
        %vm1046 = vmor %vm1044, %vm1045
        %v1047 = vsel %vm1046, %v1038, %v1043
        %v1048 = vmul.f32 %v1031, %v1047
        %v1050 = vperm.slane %v1018, 0
        %v1052 = vmul.f32 %v1048, %v1050
        %v1054 = vperm.slane %v1019, 0
        %v1056 = vadd.f32 %v1052, %v1054
        %v1057 = vpack.c.bf16 %v1056, %v1056
        %v1058 = vld [vmem:[%s743] sm:$0xf]
        %v1059 = vld [vmem:[%s743 + $0x4] sm:$0xf]
        %v1060 = vld [vmem:[%s743 + $0x8] sm:$0xf]
        %v1061 = vld [vmem:[%s743 + $0xc] sm:$0xf]
        %v1062 = vld [vmem:[%s746] sm:$0x1]
        %v1064 = vperm.slane %v1062, 0
        %v1070 = vunpack.c.l.b16 %v1058
        %v1071 = vunpack.c.l.b16 %v1059
        %v1072 = vunpack.c.l.b16 %v1060
        %v1073 = vunpack.c.l.b16 %v1061
        %v1074 = vpack.c.b16 %v1071, %v1070
        %v1075 = vpack.c.b16 %v1073, %v1072
        %v1079 = vsel %vm832, %v1057, 0
        %1081 = vmatpush.bf16.msra.mxu0 0
        %1082 = vmatpush.bf16.msra.mxu0 0
        %1083 = vmatpush.bf16.msra.mxu0 0
        %1084 = vmatpush.bf16.msra.mxu0 0
        %1085 = vmatpush.bf16.msra.mxu0 0
        %1086 = vmatpush.bf16.msra.mxu0 0
        %1087 = vmatpush.bf16.msra.mxu0 %v1075
        %1088 = vmatpush.bf16.msra.mxu0 %v1074
        %1089 = vmatmul.bf16.gmra.mxu0 %v1079
        %v1090 = vpop.f32.mrf.mxu0
        %v1091 = vadd.f32 %v1064, %v1090
        %v1092 = vpop.f32.mrf.mxu0
        %1093 = vdwg.mxu0
        %v1094 = vmul.f32 %v1091, 0.5
        %v1095 = vmul.f32 %v1091, 0.70710677
        %v1096 = vmul.f32 %v1095, %v1095
        %v1097 = vmin.f32 16.0, %v1096
        %v1098 = vmul.f32 %v1097, 2.1237322e-06
        %v1099 = vadd.f32 %v1098, 0.00028619796
        %v1100 = vmul.f32 %v1097, %v1099
        %v1101 = vadd.f32 %v1100, 0.0036580483
        %v1102 = vmul.f32 %v1097, %v1101
        %v1103 = vadd.f32 %v1102, 0.05243302
        %v1104 = vmul.f32 %v1097, %v1103
        %v1105 = vadd.f32 %v1104, 0.18741608
        %v1106 = vmul.f32 %v1097, %v1105
        %v1107 = vadd.f32 %v1106, 1.1283791
        %v1108 = vmul.f32 %v1095, %v1107
        %v1109 = vmul.f32 %v1097, 3.8918573e-05
        %v1110 = vadd.f32 %v1109, 0.001143296
        %v1111 = vmul.f32 %v1097, %v1110
        %v1112 = vadd.f32 %v1111, 0.014752088
        %v1113 = vmul.f32 %v1097, %v1112
        %v1114 = vadd.f32 %v1113, 0.112945676
        %v1115 = vmul.f32 %v1097, %v1114
        %v1116 = vadd.f32 %v1115, 0.4994258
        %v1117 = vmul.f32 %v1097, %v1116
        %v1118 = vadd.f32 %v1117, 1.0
        %v1119 = vrcp.pop %v1118
        %v1120 = vmul.f32 %v1118, %v1119
        %v1121 = vsub.f32 1.0, %v1120
        %v1122 = vmul.f32 %v1119, %v1121
        %v1123 = vadd.f32 %v1119, %v1122
        %vm1124 = vweird.f32 %v1118
        %vm1125 = vweird.f32 %v1119
        %vm1126 = vmor %vm1124, %vm1125
        %v1127 = vsel %vm1126, %v1119, %v1123
        %v1128 = vand.u32 2147483647, %v1118
        %vm1129 = vcmp.eq.f32.partialorder %v1128, 8.507059e+37
        %v1130 = vand.u32 %v1118, 2147483648
        %v1131 = vor.u32 1.1754944e-38, %v1130
        %v1132 = vsel %vm1129, %v1131, %v1127
        %v1133 = vmul.f32 %v1108, %v1132
        %v1134 = vmin.f32 %v1133, 1.0
        %v1135 = vmax.f32 %v1134, -1.0
        %v1136 = vadd.f32 %v1135, 1.0
        %v1137 = vmul.f32 %v1094, %v1136
        %v1138 = vpack.c.bf16 %v1137, %v1137
        %v1139 = vld [vmem:[%s751] sm:$0xf]
        %v1140 = vld [vmem:[%s751 + $0x4] sm:$0xf]
        %v1141 = vld [vmem:[%s751 + $0x8] sm:$0xf]
        %v1142 = vld [vmem:[%s751 + $0xc] sm:$0xf]
        %v1143 = vld [vmem:[%s751 + $0x10] sm:$0xf]
        %v1144 = vld [vmem:[%s751 + $0x14] sm:$0xf]
        %v1145 = vld [vmem:[%s751 + $0x18] sm:$0xf]
        %v1146 = vld [vmem:[%s751 + $0x1c] sm:$0xf]
        %v1147 = vld [vmem:[%s751 + $0x20] sm:$0xf]
        %v1148 = vld [vmem:[%s751 + $0x24] sm:$0xf]
        %v1149 = vld [vmem:[%s751 + $0x28] sm:$0xf]
        %v1150 = vld [vmem:[%s751 + $0x2c] sm:$0xf]
        %v1151 = vld [vmem:[%s751 + $0x30] sm:$0xf]
        %v1152 = vld [vmem:[%s751 + $0x34] sm:$0xf]
        %v1153 = vld [vmem:[%s751 + $0x38] sm:$0xf]
        %v1154 = vld [vmem:[%s751 + $0x3c] sm:$0xf]
        %v1155 = vld [vmem:[%s754] sm:$0x1]
        %v1157 = vperm.slane %v1155, 0
        %v1175 = vunpack.c.l.b16 %v1139
        %v1176 = vunpack.c.l.b16 %v1140
        %v1177 = vunpack.c.l.b16 %v1141
        %v1178 = vunpack.c.l.b16 %v1142
        %v1179 = vunpack.c.l.b16 %v1143
        %v1180 = vunpack.c.l.b16 %v1144
        %v1181 = vunpack.c.l.b16 %v1145
        %v1182 = vunpack.c.l.b16 %v1146
        %v1183 = vunpack.c.l.b16 %v1147
        %v1184 = vunpack.c.l.b16 %v1148
        %v1185 = vunpack.c.l.b16 %v1149
        %v1186 = vunpack.c.l.b16 %v1150
        %v1187 = vunpack.c.l.b16 %v1151
        %v1188 = vunpack.c.l.b16 %v1152
        %v1189 = vunpack.c.l.b16 %v1153
        %v1190 = vunpack.c.l.b16 %v1154
        %v1191 = vpack.c.b16 %v1176, %v1175
        %v1192 = vpack.c.b16 %v1178, %v1177
        %v1193 = vpack.c.b16 %v1180, %v1179
        %v1194 = vpack.c.b16 %v1182, %v1181
        %v1195 = vpack.c.b16 %v1184, %v1183
        %v1196 = vpack.c.b16 %v1186, %v1185
        %v1197 = vpack.c.b16 %v1188, %v1187
        %v1198 = vpack.c.b16 %v1190, %v1189
        %1207 = vmatpush.bf16.msra.mxu0 %v1198
        %1208 = vmatpush.bf16.msra.mxu0 %v1197
        %1209 = vmatpush.bf16.msra.mxu0 %v1196
        %1210 = vmatpush.bf16.msra.mxu0 %v1195
        %1211 = vmatpush.bf16.msra.mxu0 %v1194
        %1212 = vmatpush.bf16.msra.mxu0 %v1193
        %1213 = vmatpush.bf16.msra.mxu0 %v1192
        %1214 = vmatpush.bf16.msra.mxu0 %v1191
        %1215 = vmatmul.bf16.gmra.mxu0 %v1138
        %v1216 = vpop.f32.mrf.mxu0
        %v1217 = vadd.f32 %v1157, %v1216
        %v1218 = vpop.f32.mrf.mxu0
        %1219 = vdwg.mxu0
        %v1220 = vadd.f32 %v1056, %v1217
        %v1221 = vld [vmem:[%s757] sm:$0x1]
        %v1222 = vld [vmem:[%s760] sm:$0x1]
        %v1223 = vsel %vm832, %v1220, 0.0
        %1224 = vadd.xlane.f32.xlu0 %v1223
        %v1225 = vpop.xlane.xlu0 %1224
        %v1226 = vmul.f32 %v1225, %v1029
        %v1227 = vsub.f32 %v1220, %v1226
        %v1228 = vmul.f32 %v1227, %v1227
        %v1229 = vsel %vm832, %v1228, 0.0
        %1230 = vadd.xlane.f32.xlu0 %v1229
        %v1231 = vpop.xlane.xlu0 %1230
        %v1232 = vmul.f32 %v1231, %v1029
        %v1233 = vadd.f32 %v1232, 1e-12
        %v1234 = vrsqrt.pop %v1233
        %v1235 = vmul.f32 %v1234, %v1233
        %v1236 = vmul.f32 %v1235, %v1234
        %v1237 = vmul.f32 0.5, %v1236
        %v1238 = vsub.f32 1.5, %v1237
        %v1239 = vmul.f32 %v1234, %v1238
        %vm1240 = vweird.f32 %v1233
        %vm1241 = vweird.f32 %v1234
        %vm1242 = vmor %vm1240, %vm1241
        %v1243 = vsel %vm1242, %v1234, %v1239
        %v1244 = vmul.f32 %v1227, %v1243
        %v1246 = vperm.slane %v1221, 0
        %v1248 = vmul.f32 %v1244, %v1246
        %v1250 = vperm.slane %v1222, 0
        %v1252 = vadd.f32 %v1248, %v1250
        %1253 = vst.msk [vmem:[#allocation2] sm:$0xff] %vm832, %v1252
        %p1254 = scmp.eq.s32.totalorder %s36, 1
        // Predicated region
        $region93: #{simcse_forward.1} parent=87 // pred_check
          %p1255 = pneg %p1254
        $region94: #{simcse_forward.1} parent=87 // pred_check_branch
          %1257 = sbr.rel (%p1255) target = $region96
        $region95: #{simcse_forward.1} parent=87 // pred_region
          %v1258 = vsel %vm832, %v1252, 0.0
          %v1259 = vrot.slane %v1258, 4
          %v1260 = vadd.f32 %v1258, %v1259
          %v1261 = vrot.slane %v1260, 2
          %v1262 = vadd.f32 %v1260, %v1261
          %v1263 = vrot.slane %v1262, 1
          %v1264 = vadd.f32 %v1262, %v1263
          %v1265 = vrcp.pop 8.0
          %v1266 = vmul.f32 8.0, %v1265
          %v1267 = vsub.f32 1.0, %v1266
          %v1268 = vmul.f32 %v1265, %v1267
          %v1269 = vadd.f32 %v1265, %v1268
          %vm1270 = vweird.f32 %v1265
          %v1271 = vsel %vm1270, %v1265, %v1269
          %v1272 = vmul.f32 %v1264, %v1271
          %vm1273 = vcmask 253952
          %1274 = vst.msk [vmem:[%s709] sm:$0x1] %vm1273, %v1272
        $region96: #{simcse_forward.1} parent=87 // pred_fallthru
          _
        %s1275 = sand.u32 %s478, 1
        %s1276 = scalar_lea.sflag [#allocation5], %s1275
        %s1277 = sand.u32 %s478, 1
        %s1278 = scalar_lea.vmem [#allocation4], %s1277
        // Predicated region
        $region97: #{simcse_forward.1} parent=87 // pred_check
          %p1279 = pneg %p488
        $region98: #{simcse_forward.1} parent=87 // pred_check_branch
          %1281 = sbr.rel (%p1279) target = $region100
        $region99: #{simcse_forward.1} parent=87 // pred_region
          %1283 = vsyncadd %s1276, 0
          %s1284 = scalar_lea.hbm %s17, %s35
          %s1286 = sshll.u32 %s1278, 4
          %s1287 = int_to_ptr.vmem [resolvable:$true] %s1286
          %s1288 = sshll.u32 %s1284, 4
          %s1289 = int_to_ptr.hbm [resolvable:$true] %s1288
          %1291 = dma.vmem_to_hbm [thread:$0]  %s1287, 16, %s1289, %s1276
        $region100: #{simcse_forward.1} parent=87 // pred_fallthru
          _
      $region88: #{simcse_forward.1} parent=5 // pred_fallthru
        _
      %p1292 = scmp.le.s32.totalorder 2, %s26
      // Predicated region
      $region101: #{simcse_forward.1} parent=5 // pred_check
        %p1293 = pneg %p1292
      $region102: #{simcse_forward.1} parent=5 // pred_check_branch
        %1295 = sbr.rel (%p1293) target = $region104
      $region103: #{simcse_forward.1} parent=5 // pred_region
        %s1296 = ssub.s32 %s26, 2
        // Predicated region
        $region105: #{simcse_forward.1} parent=103 // pred_check
          %p1297 = pneg %p494
        $region106: #{simcse_forward.1} parent=103 // pred_check_branch
          %1299 = sbr.rel (%p1297) target = $region108
        $region107: #{simcse_forward.1} parent=103 // pred_region
          %s1300 = sand.u32 %s479, 1
          %s1301 = scalar_lea.sflag [#allocation5], %s1300
          %s1302 = sand.u32 %s479, 1
          %s1303 = scalar_lea.vmem [#allocation4], %s1302
          %1305 = dma.done %s1301, 16
        $region108: #{simcse_forward.1} parent=103 // pred_fallthru
          _
      $region104: #{simcse_forward.1} parent=5 // pred_fallthru
        _
    $region6: #{simcse_forward.1} parent=1 // loop_footer
      %s30 = sadd.s32 1, %s26
    $region7: #{simcse_forward.1} parent=1 // loop_footer_branch
      %25 = sbr.rel target = $region3
    $region8: #{simcse_forward.1} parent=1 // loop_exit
      _
    %1306 = vsyncpa [#allocation5], 1
    %s1307 = scalar_lea.sflag [#allocation5], 1
    %1308 = vsyncpa %s1307, 1

</llo_original>
